<compile_context>
chip_gen: v6e
topology: v6e:2x2x1
jax: 0.10.0
libtpu: 0.0.40
codegen_flags: <defaults>
</compile_context>

<pallas_src>
import functools

import jax
import jax.numpy as jnp
from jax import lax
from jax.experimental import pallas as pl
from jax.experimental.pallas import tpu as pltpu


# ------------------------------ helpers --------------------------------------

def _choose_tile(size, target, align):
    """Largest multiple of `align` that divides `size` and is <= `target`;
    falls back to the full dimension (always a legal Mosaic block)."""
    if size <= target:
        return size
    t = (target // align) * align
    while t >= align:
        if size % t == 0:
            return t
        t -= align
    return size


_VMEM_LIMIT = None


def _vmem_limit_bytes():
    """Generation-aware scoped-VMEM budget: ~3/4 of physical, clamped to
    [32 MiB, 96 MiB] (=> ~48 MiB on v7x's 64 MiB, 96 MiB on v5e/v6e)."""
    global _VMEM_LIMIT
    if _VMEM_LIMIT is None:
        try:
            cap = int(pltpu.get_tpu_info().vmem_capacity_bytes)
            _VMEM_LIMIT = max(32 << 20, min(96 << 20, (cap * 3) // 4))
        except Exception:
            _VMEM_LIMIT = 48 << 20
    return _VMEM_LIMIT


# --------------------------- tiled linear (matmul) ---------------------------

def _matmul_kernel(x_ref, w_ref, o_ref, acc_ref):
    @pl.when(pl.program_id(2) == 0)
    def _init():
        acc_ref[...] = jnp.zeros_like(acc_ref)

    acc_ref[...] += jnp.dot(x_ref[...], w_ref[...],
                            preferred_element_type=jnp.float32)

    @pl.when(pl.program_id(2) == pl.num_programs(2) - 1)
    def _store():
        o_ref[...] = acc_ref[...].astype(o_ref.dtype)


def _matmul_bias_kernel(x_ref, w_ref, b_ref, o_ref, acc_ref):
    # NOTE: the bias BlockSpec index map does not depend on the K axis, so its
    # (1, tn) block stays resident across the reduction (no per-K re-fetch).
    @pl.when(pl.program_id(2) == 0)
    def _init():
        acc_ref[...] = jnp.zeros_like(acc_ref)

    acc_ref[...] += jnp.dot(x_ref[...], w_ref[...],
                            preferred_element_type=jnp.float32)

    @pl.when(pl.program_id(2) == pl.num_programs(2) - 1)
    def _store():
        o_ref[...] = (acc_ref[...] + b_ref[...].astype(jnp.float32)
                      ).astype(o_ref.dtype)


def pallas_linear(x2d, w_t, bias=None, out_dtype=None, tm=512, tn=512, tk=1024):
    """x2d: [M, K]; w_t: [K, N] (PyTorch weight transposed); bias: [1, N] f32."""
    M, K = x2d.shape
    K2, N = w_t.shape
    assert K == K2
    out_dtype = x2d.dtype if out_dtype is None else out_dtype

    # Pad M so large activations get full 256-wide MXU passes (v6e/v7x) rather
    # than ragged full-M tiles; small M is left alone (full-dim blocks are legal).
    if M > 16:
        m_align = 256 if M > 256 else 16
        m_pad = (-M) % m_align
    else:
        m_pad = 0
    if m_pad:
        x2d = jnp.pad(x2d, ((0, m_pad), (0, 0)))
    Mp = M + m_pad

    sub_align = 16 if x2d.dtype == jnp.bfloat16 else 8   # bf16 packs 16 sublanes
    tm = _choose_tile(Mp, tm, sub_align)
    tn = _choose_tile(N, tn, 128)
    tk = K if K <= 2048 else _choose_tile(K, tk, 128)
    grid = (Mp // tm, N // tn, K // tk)   # reduction axis last

    in_specs = [pl.BlockSpec((tm, tk), lambda i, j, k: (i, k)),
                pl.BlockSpec((tk, tn), lambda i, j, k: (k, j))]
    operands = [x2d, w_t]
    kernel = _matmul_kernel
    if bias is not None:
        in_specs.append(pl.BlockSpec((1, tn), lambda i, j, k: (0, j)))
        operands.append(bias)
        kernel = _matmul_bias_kernel

    out = pl.pallas_call(
        kernel,
        out_shape=jax.ShapeDtypeStruct((Mp, N), out_dtype),
        grid=grid,
        in_specs=in_specs,
        out_specs=pl.BlockSpec((tm, tn), lambda i, j, k: (i, j)),
        scratch_shapes=[pltpu.VMEM((tm, tn), jnp.float32)],
        compiler_params=pltpu.CompilerParams(
            dimension_semantics=("parallel", "parallel", "arbitrary"),
            vmem_limit_bytes=_vmem_limit_bytes()),
    )(*operands)

    if m_pad:
        out = out[:M]
    return out


# ----------------------- fused multi-head attention --------------------------
# Grid = (batch, query-tile). KV blocks' index maps ignore the q-tile axis, so
# they stay resident in VMEM per batch while query/output tiles pipeline.
# TODO(synk): for long sequences (m >> 1k) switch to an online-softmax (flash)
# formulation with a KV grid axis instead of materialising the (tq, m) scores.

def _mha_kernel(q_ref, k_ref, v_ref, o_ref, *, heads, dim_head):
    # q_ref: (1, tq, inner); k_ref/v_ref: (1, m, inner); scale folded into wq.
    outs = []
    for h in range(heads):            # small, statically unrolled head loop
        s0 = h * dim_head
        q_h = q_ref[0, :, s0:s0 + dim_head]          # (tq, dh)
        k_h = k_ref[0, :, s0:s0 + dim_head]          # (m,  dh)
        v_h = v_ref[0, :, s0:s0 + dim_head]          # (m,  dh)
        # scores: contract last dims directly (no k.T materialisation)
        s = lax.dot_general(q_h, k_h, (((1,), (1,)), ((), ())),
                            preferred_element_type=jnp.float32)      # (tq, m)
        s = s - jnp.max(s, axis=-1, keepdims=True)
        p = jnp.exp(s)
        p = p * pl.reciprocal(jnp.sum(p, axis=-1, keepdims=True), approx=True)
        o = jnp.dot(p.astype(v_h.dtype), v_h,
                    preferred_element_type=jnp.float32)               # (tq, dh)
        outs.append(o)
    # single lane-dense store of all heads (last dim = inner, multiple of 128)
    o_ref[0] = jnp.concatenate(outs, axis=-1).astype(o_ref.dtype)


def _mha_call(q_arr, kv_arr, q_col, k_col, v_col, kv_len, heads, dim_head,
              tq_target=128):
    """q_arr holds q in column-block `q_col`; kv_arr holds k/v in column blocks
    `k_col`/`v_col` (column blocks of width inner = heads*dim_head)."""
    b, n, _ = q_arr.shape
    inner = heads * dim_head
    tq = _choose_tile(n, tq_target, 8)
    kernel = functools.partial(_mha_kernel, heads=heads, dim_head=dim_head)
    return pl.pallas_call(
        kernel,
        out_shape=jax.ShapeDtypeStruct((b, n, inner), q_arr.dtype),
        grid=(b, n // tq),
        in_specs=[
            pl.BlockSpec((1, tq, inner), lambda bi, qi: (bi, qi, q_col)),
            pl.BlockSpec((1, kv_len, inner), lambda bi, qi: (bi, 0, k_col)),
            pl.BlockSpec((1, kv_len, inner), lambda bi, qi: (bi, 0, v_col)),
        ],
        out_specs=pl.BlockSpec((1, tq, inner), lambda bi, qi: (bi, qi, 0)),
        compiler_params=pltpu.CompilerParams(
            dimension_semantics=("parallel", "parallel"),
            vmem_limit_bytes=_vmem_limit_bytes()),
    )(q_arr, kv_arr, kv_arr)


def pallas_mha_self(qkv, heads, dim_head):
    # qkv: (b, n, 3*inner) -- q | k | v column blocks of one fused projection
    _, n, _ = qkv.shape
    return _mha_call(qkv, qkv, 0, 1, 2, n, heads, dim_head)


def pallas_mha_cross(q, kv, heads, dim_head):
    # q: (b, n, inner); kv: (b, m, 2*inner) -- k | v column blocks
    _, m, _ = kv.shape
    return _mha_call(q, kv, 0, 0, 1, m, heads, dim_head)


# --------------------------- module-equivalent --------------------------------

def init_attention_params(key, dim, heads, dim_head):
    inner_dim = heads * dim_head
    k1, k2, k3, k4, k5 = jax.random.split(key, 5)
    s = 0.1
    return {
        # PyTorch nn.Linear stores weight as [out_features, in_features]
        "wq": s * jax.random.normal(k1, (inner_dim, dim), jnp.float32),
        "wk": s * jax.random.normal(k2, (inner_dim, dim), jnp.float32),
        "wv": s * jax.random.normal(k3, (inner_dim, dim), jnp.float32),
        "wo": s * jax.random.normal(k4, (dim, inner_dim), jnp.float32),
        "bo": s * jax.random.normal(k5, (dim,), jnp.float32),
    }


def attention_forward(params, x, heads, dim_head, context=None,
                      kv_include_self=False, compute_dtype=jnp.bfloat16):
    b, n, dim = x.shape
    inner = heads * dim_head
    scale = dim_head ** (-0.5)
    out_dtype = x.dtype

    self_attn = (context is None) and (not kv_include_self)
    if context is None:
        context = x
    if kv_include_self:
        context = jnp.concatenate([x, context], axis=1)
    m = context.shape[1]

    # Fold the softmax scale into the f32 q-projection weights (exact vs the
    # reference's f32 logit scaling; removes the per-step VPU multiply).
    wq_scaled = params["wq"] * scale

    xc = x.astype(compute_dtype).reshape(b * n, dim)

    if self_attn:
        # Fused QKV projection: activations read once, lane-dense 3*inner output.
        w_qkv_t = jnp.concatenate(
            [wq_scaled, params["wk"], params["wv"]], axis=0).T.astype(compute_dtype)
        qkv = pallas_linear(xc, w_qkv_t).reshape(b, n, 3 * inner)
        attn_out = pallas_mha_self(qkv, heads, dim_head)               # (b, n, inner)
    else:
        cc = context.astype(compute_dtype).reshape(b * m, dim)
        wq_t = wq_scaled.T.astype(compute_dtype)
        w_kv_t = jnp.concatenate(
            [params["wk"], params["wv"]], axis=0).T.astype(compute_dtype)
        q = pallas_linear(xc, wq_t).reshape(b, n, inner)
        kv = pallas_linear(cc, w_kv_t).reshape(b, m, 2 * inner)
        attn_out = pallas_mha_cross(q, kv, heads, dim_head)            # (b, n, inner)

    if heads == 1 and dim_head == dim:         # project_out == False -> Identity
        return attn_out.astype(out_dtype)

    wo_t = params["wo"].T.astype(compute_dtype)
    bo = params["bo"].astype(jnp.float32).reshape(1, dim)
    out = pallas_linear(attn_out.reshape(b * n, inner), wo_t, bias=bo,
                        out_dtype=out_dtype)
    return out.reshape(b, n, dim)


# ------------------------------ reference -------------------------------------

def attention_reference(params, x, heads, dim_head, context=None,
                        kv_include_self=False):
    b, n, dim = x.shape
    if context is None:
        context = x
    if kv_include_self:
        context = jnp.concatenate([x, context], axis=1)
    m = context.shape[1]
    scale = dim_head ** (-0.5)

    q = x @ params["wq"].T
    k = context @ params["wk"].T
    v = context @ params["wv"].T

    def split(t, s):
        return t.reshape(b, s, heads, dim_head).transpose(0, 2, 1, 3)

    qh, kh, vh = split(q, n), split(k, m), split(v, m)
    dots = jnp.einsum("bhqd,bhkd->bhqk", qh, kh) * scale
    attn = jax.nn.softmax(dots, axis=-1)
    out = jnp.einsum("bhqk,bhkd->bhqd", attn, vh)
    out = out.transpose(0, 2, 1, 3).reshape(b, n, heads * dim_head)
    if heads == 1 and dim_head == dim:
        return out
    return out @ params["wo"].T + params["bo"]


# -------------------------------- main -----------------------------------------

if __name__ == "__main__":
    dim, heads, dim_head = 32, 4, 32       # inner_dim = 128 (lane-dense merged heads)
    b, n, m_ctx = 2, 8, 6

    key = jax.random.PRNGKey(0)
    kp, kx, kc = jax.random.split(key, 3)
    params = init_attention_params(kp, dim, heads, dim_head)
    x = jax.random.normal(kx, (b, n, dim), jnp.float32)
    ctx = jax.random.normal(kc, (b, m_ctx, dim), jnp.float32)

    f_self = jax.jit(functools.partial(attention_forward,
                                       heads=heads, dim_head=dim_head))
    f_cross = jax.jit(functools.partial(attention_forward, heads=heads,
                                        dim_head=dim_head, kv_include_self=True))

    # self-attention (context=None) -- fused QKV path
    out_self = jax.block_until_ready(f_self(params, x))
    ref_self = attention_reference(params, x, heads, dim_head)
    assert out_self.shape == (b, n, dim)
    err_self = float(jnp.max(jnp.abs(out_self - ref_self)) /
                     (jnp.max(jnp.abs(ref_self)) + 1e-6))
    # bf16 MXU operands + approx reciprocal -> loose tolerance vs f32 reference
    assert err_self < 5e-2, f"self-attention mismatch: rel err {err_self}"

    # cross-attention with kv_include_self=True -- fused KV path
    out_cross = jax.block_until_ready(f_cross(params, x, context=ctx))
    ref_cross = attention_reference(params, x, heads, dim_head,
                                    context=ctx, kv_include_self=True)
    assert out_cross.shape == (b, n, dim)
    err_cross = float(jnp.max(jnp.abs(out_cross - ref_cross)) /
                      (jnp.max(jnp.abs(ref_cross)) + 1e-6))
    assert err_cross < 5e-2, f"cross-attention mismatch: rel err {err_cross}"

    # TODO(synk): dropout (p=0.0 here) omitted; add stateful PRNG masking if p>0.
    print("KERNEL_OK")
</pallas_src>

<mosaic_0001>
module attributes {stable_mosaic.version = 11 : i64} {
  func.func @_mha_kernel(%arg0: i32, %arg1: i32, %arg2: memref<1x8x128xbf16, #tpu.memory_space<vmem>>, %arg3: memref<1x8x128xbf16, #tpu.memory_space<vmem>>, %arg4: memref<1x8x128xbf16, #tpu.memory_space<vmem>>, %arg5: memref<1x8x128xbf16, #tpu.memory_space<vmem>>) attributes {dimension_semantics = [#tpu.dimension_semantics<parallel>, #tpu.dimension_semantics<parallel>], iteration_bounds = array<i64: 2, 1>, scalar_prefetch = 0 : i64, scratch_operands = 0 : i64, tpu.core_type = #tpu.core_type<tc>, window_params = [{transform_indices = @transform_0, window_bounds = array<i64: 1, 8, 128>}, {transform_indices = @transform_1, window_bounds = array<i64: 1, 8, 128>}, {transform_indices = @transform_2, window_bounds = array<i64: 1, 8, 128>}, {transform_indices = @transform_3, window_bounds = array<i64: 1, 8, 128>}]} {
    %c0 = arith.constant 0 : index
    %c0_0 = arith.constant 0 : index
    %c0_1 = arith.constant 0 : index
    %0 = vector.load %arg2[%c0, %c0_0, %c0_1] : memref<1x8x128xbf16, #tpu.memory_space<vmem>>, vector<1x8x32xbf16>
    %1 = vector.shape_cast %0 : vector<1x8x32xbf16> to vector<8x32xbf16>
    %c0_2 = arith.constant 0 : index
    %c0_3 = arith.constant 0 : index
    %c0_4 = arith.constant 0 : index
    %2 = vector.load %arg3[%c0_2, %c0_3, %c0_4] : memref<1x8x128xbf16, #tpu.memory_space<vmem>>, vector<1x8x32xbf16>
    %3 = vector.shape_cast %2 : vector<1x8x32xbf16> to vector<8x32xbf16>
    %c0_5 = arith.constant 0 : index
    %c0_6 = arith.constant 0 : index
    %c0_7 = arith.constant 0 : index
    %4 = vector.load %arg4[%c0_5, %c0_6, %c0_7] : memref<1x8x128xbf16, #tpu.memory_space<vmem>>, vector<1x8x32xbf16>
    %5 = vector.shape_cast %4 : vector<1x8x32xbf16> to vector<8x32xbf16>
    %cst = arith.constant dense<0.000000e+00> : vector<8x8xf32>
    %6 = tpu.matmul %1, %3, %cst {dimension_numbers = #tpu.dot_dimension_numbers<[1], [1], [0], [0], [0, 0, 1, 0], [], []>} : vector<8x32xbf16>, vector<8x32xbf16>, vector<8x8xf32> -> vector<8x8xf32>
    %cst_8 = arith.constant dense<0xFF800000> : vector<8xf32>
    %7 = vector.multi_reduction <maximumf>, %6, %cst_8 [1] : vector<8x8xf32> to vector<8xf32>
    %8 = vector.shape_cast %7 : vector<8xf32> to vector<8x1xf32>
    %9 = vector.broadcast %8 : vector<8x1xf32> to vector<8x8xf32>
    %10 = arith.subf %6, %9 : vector<8x8xf32>
    %11 = math.exp %10 : vector<8x8xf32>
    %cst_9 = arith.constant dense<0.000000e+00> : vector<8xf32>
    %12 = vector.multi_reduction <add>, %11, %cst_9 [1] : vector<8x8xf32> to vector<8xf32>
    %13 = vector.shape_cast %12 : vector<8xf32> to vector<8x1xf32>
    %14 = tpu.reciprocal %13 {approx = true} : vector<8x1xf32> -> vector<8x1xf32>
    %15 = vector.broadcast %14 : vector<8x1xf32> to vector<8x8xf32>
    %16 = arith.mulf %11, %15 : vector<8x8xf32>
    %17 = arith.truncf %16 : vector<8x8xf32> to vector<8x8xbf16>
    %cst_10 = arith.constant dense<0.000000e+00> : vector<8x32xf32>
    %18 = tpu.matmul %17, %5, %cst_10 {dimension_numbers = #tpu.dot_dimension_numbers<[1], [0], [0], [1], [0, 0, 1, 1], [], []>} : vector<8x8xbf16>, vector<8x32xbf16>, vector<8x32xf32> -> vector<8x32xf32>
    %c0_11 = arith.constant 0 : index
    %c0_12 = arith.constant 0 : index
    %c32 = arith.constant 32 : index
    %19 = vector.load %arg2[%c0_11, %c0_12, %c32] : memref<1x8x128xbf16, #tpu.memory_space<vmem>>, vector<1x8x32xbf16>
    %20 = vector.shape_cast %19 : vector<1x8x32xbf16> to vector<8x32xbf16>
    %c0_13 = arith.constant 0 : index
    %c0_14 = arith.constant 0 : index
    %c32_15 = arith.constant 32 : index
    %21 = vector.load %arg3[%c0_13, %c0_14, %c32_15] : memref<1x8x128xbf16, #tpu.memory_space<vmem>>, vector<1x8x32xbf16>
    %22 = vector.shape_cast %21 : vector<1x8x32xbf16> to vector<8x32xbf16>
    %c0_16 = arith.constant 0 : index
    %c0_17 = arith.constant 0 : index
    %c32_18 = arith.constant 32 : index
    %23 = vector.load %arg4[%c0_16, %c0_17, %c32_18] : memref<1x8x128xbf16, #tpu.memory_space<vmem>>, vector<1x8x32xbf16>
    %24 = vector.shape_cast %23 : vector<1x8x32xbf16> to vector<8x32xbf16>
    %cst_19 = arith.constant dense<0.000000e+00> : vector<8x8xf32>
    %25 = tpu.matmul %20, %22, %cst_19 {dimension_numbers = #tpu.dot_dimension_numbers<[1], [1], [0], [0], [0, 0, 1, 0], [], []>} : vector<8x32xbf16>, vector<8x32xbf16>, vector<8x8xf32> -> vector<8x8xf32>
    %cst_20 = arith.constant dense<0xFF800000> : vector<8xf32>
    %26 = vector.multi_reduction <maximumf>, %25, %cst_20 [1] : vector<8x8xf32> to vector<8xf32>
    %27 = vector.shape_cast %26 : vector<8xf32> to vector<8x1xf32>
    %28 = vector.broadcast %27 : vector<8x1xf32> to vector<8x8xf32>
    %29 = arith.subf %25, %28 : vector<8x8xf32>
    %30 = math.exp %29 : vector<8x8xf32>
    %cst_21 = arith.constant dense<0.000000e+00> : vector<8xf32>
    %31 = vector.multi_reduction <add>, %30, %cst_21 [1] : vector<8x8xf32> to vector<8xf32>
    %32 = vector.shape_cast %31 : vector<8xf32> to vector<8x1xf32>
    %33 = tpu.reciprocal %32 {approx = true} : vector<8x1xf32> -> vector<8x1xf32>
    %34 = vector.broadcast %33 : vector<8x1xf32> to vector<8x8xf32>
    %35 = arith.mulf %30, %34 : vector<8x8xf32>
    %36 = arith.truncf %35 : vector<8x8xf32> to vector<8x8xbf16>
    %cst_22 = arith.constant dense<0.000000e+00> : vector<8x32xf32>
    %37 = tpu.matmul %36, %24, %cst_22 {dimension_numbers = #tpu.dot_dimension_numbers<[1], [0], [0], [1], [0, 0, 1, 1], [], []>} : vector<8x8xbf16>, vector<8x32xbf16>, vector<8x32xf32> -> vector<8x32xf32>
    %c0_23 = arith.constant 0 : index
    %c0_24 = arith.constant 0 : index
    %c64 = arith.constant 64 : index
    %38 = vector.load %arg2[%c0_23, %c0_24, %c64] : memref<1x8x128xbf16, #tpu.memory_space<vmem>>, vector<1x8x32xbf16>
    %39 = vector.shape_cast %38 : vector<1x8x32xbf16> to vector<8x32xbf16>
    %c0_25 = arith.constant 0 : index
    %c0_26 = arith.constant 0 : index
    %c64_27 = arith.constant 64 : index
    %40 = vector.load %arg3[%c0_25, %c0_26, %c64_27] : memref<1x8x128xbf16, #tpu.memory_space<vmem>>, vector<1x8x32xbf16>
    %41 = vector.shape_cast %40 : vector<1x8x32xbf16> to vector<8x32xbf16>
    %c0_28 = arith.constant 0 : index
    %c0_29 = arith.constant 0 : index
    %c64_30 = arith.constant 64 : index
    %42 = vector.load %arg4[%c0_28, %c0_29, %c64_30] : memref<1x8x128xbf16, #tpu.memory_space<vmem>>, vector<1x8x32xbf16>
    %43 = vector.shape_cast %42 : vector<1x8x32xbf16> to vector<8x32xbf16>
    %cst_31 = arith.constant dense<0.000000e+00> : vector<8x8xf32>
    %44 = tpu.matmul %39, %41, %cst_31 {dimension_numbers = #tpu.dot_dimension_numbers<[1], [1], [0], [0], [0, 0, 1, 0], [], []>} : vector<8x32xbf16>, vector<8x32xbf16>, vector<8x8xf32> -> vector<8x8xf32>
    %cst_32 = arith.constant dense<0xFF800000> : vector<8xf32>
    %45 = vector.multi_reduction <maximumf>, %44, %cst_32 [1] : vector<8x8xf32> to vector<8xf32>
    %46 = vector.shape_cast %45 : vector<8xf32> to vector<8x1xf32>
    %47 = vector.broadcast %46 : vector<8x1xf32> to vector<8x8xf32>
    %48 = arith.subf %44, %47 : vector<8x8xf32>
    %49 = math.exp %48 : vector<8x8xf32>
    %cst_33 = arith.constant dense<0.000000e+00> : vector<8xf32>
    %50 = vector.multi_reduction <add>, %49, %cst_33 [1] : vector<8x8xf32> to vector<8xf32>
    %51 = vector.shape_cast %50 : vector<8xf32> to vector<8x1xf32>
    %52 = tpu.reciprocal %51 {approx = true} : vector<8x1xf32> -> vector<8x1xf32>
    %53 = vector.broadcast %52 : vector<8x1xf32> to vector<8x8xf32>
    %54 = arith.mulf %49, %53 : vector<8x8xf32>
    %55 = arith.truncf %54 : vector<8x8xf32> to vector<8x8xbf16>
    %cst_34 = arith.constant dense<0.000000e+00> : vector<8x32xf32>
    %56 = tpu.matmul %55, %43, %cst_34 {dimension_numbers = #tpu.dot_dimension_numbers<[1], [0], [0], [1], [0, 0, 1, 1], [], []>} : vector<8x8xbf16>, vector<8x32xbf16>, vector<8x32xf32> -> vector<8x32xf32>
    %c0_35 = arith.constant 0 : index
    %c0_36 = arith.constant 0 : index
    %c96 = arith.constant 96 : index
    %57 = vector.load %arg2[%c0_35, %c0_36, %c96] : memref<1x8x128xbf16, #tpu.memory_space<vmem>>, vector<1x8x32xbf16>
    %58 = vector.shape_cast %57 : vector<1x8x32xbf16> to vector<8x32xbf16>
    %c0_37 = arith.constant 0 : index
    %c0_38 = arith.constant 0 : index
    %c96_39 = arith.constant 96 : index
    %59 = vector.load %arg3[%c0_37, %c0_38, %c96_39] : memref<1x8x128xbf16, #tpu.memory_space<vmem>>, vector<1x8x32xbf16>
    %60 = vector.shape_cast %59 : vector<1x8x32xbf16> to vector<8x32xbf16>
    %c0_40 = arith.constant 0 : index
    %c0_41 = arith.constant 0 : index
    %c96_42 = arith.constant 96 : index
    %61 = vector.load %arg4[%c0_40, %c0_41, %c96_42] : memref<1x8x128xbf16, #tpu.memory_space<vmem>>, vector<1x8x32xbf16>
    %62 = vector.shape_cast %61 : vector<1x8x32xbf16> to vector<8x32xbf16>
    %cst_43 = arith.constant dense<0.000000e+00> : vector<8x8xf32>
    %63 = tpu.matmul %58, %60, %cst_43 {dimension_numbers = #tpu.dot_dimension_numbers<[1], [1], [0], [0], [0, 0, 1, 0], [], []>} : vector<8x32xbf16>, vector<8x32xbf16>, vector<8x8xf32> -> vector<8x8xf32>
    %cst_44 = arith.constant dense<0xFF800000> : vector<8xf32>
    %64 = vector.multi_reduction <maximumf>, %63, %cst_44 [1] : vector<8x8xf32> to vector<8xf32>
    %65 = vector.shape_cast %64 : vector<8xf32> to vector<8x1xf32>
    %66 = vector.broadcast %65 : vector<8x1xf32> to vector<8x8xf32>
    %67 = arith.subf %63, %66 : vector<8x8xf32>
    %68 = math.exp %67 : vector<8x8xf32>
    %cst_45 = arith.constant dense<0.000000e+00> : vector<8xf32>
    %69 = vector.multi_reduction <add>, %68, %cst_45 [1] : vector<8x8xf32> to vector<8xf32>
    %70 = vector.shape_cast %69 : vector<8xf32> to vector<8x1xf32>
    %71 = tpu.reciprocal %70 {approx = true} : vector<8x1xf32> -> vector<8x1xf32>
    %72 = vector.broadcast %71 : vector<8x1xf32> to vector<8x8xf32>
    %73 = arith.mulf %68, %72 : vector<8x8xf32>
    %74 = arith.truncf %73 : vector<8x8xf32> to vector<8x8xbf16>
    %cst_46 = arith.constant dense<0.000000e+00> : vector<8x32xf32>
    %75 = tpu.matmul %74, %62, %cst_46 {dimension_numbers = #tpu.dot_dimension_numbers<[1], [0], [0], [1], [0, 0, 1, 1], [], []>} : vector<8x8xbf16>, vector<8x32xbf16>, vector<8x32xf32> -> vector<8x32xf32>
    %76 = tpu.concatenate %18, %37, %56, %75 in 1 : vector<8x32xf32>, vector<8x32xf32>, vector<8x32xf32>, vector<8x32xf32> -> vector<8x128xf32>
    %77 = arith.truncf %76 : vector<8x128xf32> to vector<8x128xbf16>
    %c0_47 = arith.constant 0 : index
    %c0_48 = arith.constant 0 : index
    %c0_49 = arith.constant 0 : index
    %78 = vector.load %arg5[%c0_47, %c0_48, %c0_49] : memref<1x8x128xbf16, #tpu.memory_space<vmem>>, vector<1x8x128xbf16>
    %79 = vector.shape_cast %78 : vector<1x8x128xbf16> to vector<8x128xbf16>
    %80 = vector.shape_cast %77 : vector<8x128xbf16> to vector<1x8x128xbf16>
    tpu.vector_store %arg5[%c0_47, %c0_48, %c0_49], %80 {strides = array<i32>} : memref<1x8x128xbf16, #tpu.memory_space<vmem>>, vector<1x8x128xbf16>,
    return
  }
  func.func @transform_0(%arg0: i32, %arg1: i32) -> (i32, i32, i32) {
    %c0_i32 = arith.constant 0 : i32
    %c0_i32_0 = arith.constant 0 : i32
    return %arg0, %arg1, %c0_i32 : i32, i32, i32
  }
  func.func @transform_1(%arg0: i32, %arg1: i32) -> (i32, i32, i32) {
    %c0_i32 = arith.constant 0 : i32
    %c1_i32 = arith.constant 1 : i32
    %c0_i32_0 = arith.constant 0 : i32
    return %arg0, %c0_i32, %c1_i32 : i32, i32, i32
  }
  func.func @transform_2(%arg0: i32, %arg1: i32) -> (i32, i32, i32) {
    %c0_i32 = arith.constant 0 : i32
    %c2_i32 = arith.constant 2 : i32
    %c0_i32_0 = arith.constant 0 : i32
    return %arg0, %c0_i32, %c2_i32 : i32, i32, i32
  }
  func.func @transform_3(%arg0: i32, %arg1: i32) -> (i32, i32, i32) {
    %c0_i32 = arith.constant 0 : i32
    %c0_i32_0 = arith.constant 0 : i32
    return %arg0, %arg1, %c0_i32 : i32, i32, i32
  }
}

module attributes {stable_mosaic.version = 11 : i64} {
  func.func @_matmul_kernel(%arg0: i32, %arg1: i32, %arg2: i32, %arg3: memref<16x32xbf16, #tpu.memory_space<vmem>>, %arg4: memref<32x384xbf16, #tpu.memory_space<vmem>>, %arg5: memref<16x384xbf16, #tpu.memory_space<vmem>>, %arg6: memref<16x384xf32, #tpu.memory_space<vmem>>) attributes {dimension_semantics = [#tpu.dimension_semantics<parallel>, #tpu.dimension_semantics<parallel>, #tpu.dimension_semantics<arbitrary>], iteration_bounds = array<i64: 1, 1, 1>, scalar_prefetch = 0 : i64, scratch_operands = 1 : i64, tpu.core_type = #tpu.core_type<tc>, window_params = [{transform_indices = @transform_0, window_bounds = array<i64: 16, 32>}, {transform_indices = @transform_1, window_bounds = array<i64: 32, 384>}, {transform_indices = @transform_2, window_bounds = array<i64: 16, 384>}]} {
    %c0_i32 = arith.constant 0 : i32
    %0 = arith.cmpi eq, %arg2, %c0_i32 : i32
    %1 = arith.extui %0 : i1 to i32
    %c0_i32_0 = arith.constant 0 : i32
    %2 = arith.cmpi ne, %1, %c0_i32_0 : i32
    scf.if %2 {
      %cst_10 = arith.constant 0.000000e+00 : f32
      %12 = vector.broadcast %cst_10 : f32 to vector<16x384xf32>
      %c0_11 = arith.constant 0 : index
      %c0_12 = arith.constant 0 : index
      %13 = vector.load %arg6[%c0_11, %c0_12] : memref<16x384xf32, #tpu.memory_space<vmem>>, vector<16x384xf32>
      tpu.vector_store %arg6[%c0_11, %c0_12], %12 {strides = array<i32>} : memref<16x384xf32, #tpu.memory_space<vmem>>, vector<16x384xf32>,
    } else {
    }
    %c0 = arith.constant 0 : index
    %c0_1 = arith.constant 0 : index
    %3 = vector.load %arg6[%c0, %c0_1] : memref<16x384xf32, #tpu.memory_space<vmem>>, vector<16x384xf32>
    %c0_2 = arith.constant 0 : index
    %c0_3 = arith.constant 0 : index
    %4 = vector.load %arg3[%c0_2, %c0_3] : memref<16x32xbf16, #tpu.memory_space<vmem>>, vector<16x32xbf16>
    %c0_4 = arith.constant 0 : index
    %c0_5 = arith.constant 0 : index
    %5 = vector.load %arg4[%c0_4, %c0_5] : memref<32x384xbf16, #tpu.memory_space<vmem>>, vector<32x384xbf16>
    %cst = arith.constant dense<0.000000e+00> : vector<16x384xf32>
    %6 = tpu.matmul %4, %5, %cst {dimension_numbers = #tpu.dot_dimension_numbers<[1], [0], [0], [1], [0, 0, 1, 1], [], []>} : vector<16x32xbf16>, vector<32x384xbf16>, vector<16x384xf32> -> vector<16x384xf32>
    %7 = arith.addf %3, %6 : vector<16x384xf32>
    %c0_6 = arith.constant 0 : index
    %c0_7 = arith.constant 0 : index
    %8 = vector.load %arg6[%c0_6, %c0_7] : memref<16x384xf32, #tpu.memory_space<vmem>>, vector<16x384xf32>
    tpu.vector_store %arg6[%c0_6, %c0_7], %7 {strides = array<i32>} : memref<16x384xf32, #tpu.memory_space<vmem>>, vector<16x384xf32>,
    %c0_i32_8 = arith.constant 0 : i32
    %9 = arith.cmpi eq, %arg2, %c0_i32_8 : i32
    %10 = arith.extui %9 : i1 to i32
    %c0_i32_9 = arith.constant 0 : i32
    %11 = arith.cmpi ne, %10, %c0_i32_9 : i32
    scf.if %11 {
      %c0_10 = arith.constant 0 : index
      %c0_11 = arith.constant 0 : index
      %12 = vector.load %arg6[%c0_10, %c0_11] : memref<16x384xf32, #tpu.memory_space<vmem>>, vector<16x384xf32>
      %13 = arith.truncf %12 : vector<16x384xf32> to vector<16x384xbf16>
      %c0_12 = arith.constant 0 : index
      %c0_13 = arith.constant 0 : index
      %14 = vector.load %arg5[%c0_12, %c0_13] : memref<16x384xbf16, #tpu.memory_space<vmem>>, vector<16x384xbf16>
      tpu.vector_store %arg5[%c0_12, %c0_13], %13 {strides = array<i32>} : memref<16x384xbf16, #tpu.memory_space<vmem>>, vector<16x384xbf16>,
    } else {
    }
    return
  }
  func.func @transform_0(%arg0: i32, %arg1: i32, %arg2: i32) -> (i32, i32) {
    %c0_i32 = arith.constant 0 : i32
    return %arg0, %arg2 : i32, i32
  }
  func.func @transform_1(%arg0: i32, %arg1: i32, %arg2: i32) -> (i32, i32) {
    %c0_i32 = arith.constant 0 : i32
    return %arg2, %arg1 : i32, i32
  }
  func.func @transform_2(%arg0: i32, %arg1: i32, %arg2: i32) -> (i32, i32) {
    %c0_i32 = arith.constant 0 : i32
    return %arg0, %arg1 : i32, i32
  }
}

module attributes {stable_mosaic.version = 11 : i64} {
  func.func @_matmul_bias_kernel(%arg0: i32, %arg1: i32, %arg2: i32, %arg3: memref<16x128xbf16, #tpu.memory_space<vmem>>, %arg4: memref<128x32xbf16, #tpu.memory_space<vmem>>, %arg5: memref<1x32xf32, #tpu.memory_space<vmem>>, %arg6: memref<16x32xf32, #tpu.memory_space<vmem>>, %arg7: memref<16x32xf32, #tpu.memory_space<vmem>>) attributes {dimension_semantics = [#tpu.dimension_semantics<parallel>, #tpu.dimension_semantics<parallel>, #tpu.dimension_semantics<arbitrary>], iteration_bounds = array<i64: 1, 1, 1>, scalar_prefetch = 0 : i64, scratch_operands = 1 : i64, tpu.core_type = #tpu.core_type<tc>, window_params = [{transform_indices = @transform_0, window_bounds = array<i64: 16, 128>}, {transform_indices = @transform_1, window_bounds = array<i64: 128, 32>}, {transform_indices = @transform_2, window_bounds = array<i64: 1, 32>}, {transform_indices = @transform_3, window_bounds = array<i64: 16, 32>}]} {
    %c0_i32 = arith.constant 0 : i32
    %0 = arith.cmpi eq, %arg2, %c0_i32 : i32
    %1 = arith.extui %0 : i1 to i32
    %c0_i32_0 = arith.constant 0 : i32
    %2 = arith.cmpi ne, %1, %c0_i32_0 : i32
    scf.if %2 {
      %cst_10 = arith.constant 0.000000e+00 : f32
      %12 = vector.broadcast %cst_10 : f32 to vector<16x32xf32>
      %c0_11 = arith.constant 0 : index
      %c0_12 = arith.constant 0 : index
      %13 = vector.load %arg7[%c0_11, %c0_12] : memref<16x32xf32, #tpu.memory_space<vmem>>, vector<16x32xf32>
      tpu.vector_store %arg7[%c0_11, %c0_12], %12 {strides = array<i32>} : memref<16x32xf32, #tpu.memory_space<vmem>>, vector<16x32xf32>,
    } else {
    }
    %c0 = arith.constant 0 : index
    %c0_1 = arith.constant 0 : index
    %3 = vector.load %arg7[%c0, %c0_1] : memref<16x32xf32, #tpu.memory_space<vmem>>, vector<16x32xf32>
    %c0_2 = arith.constant 0 : index
    %c0_3 = arith.constant 0 : index
    %4 = vector.load %arg3[%c0_2, %c0_3] : memref<16x128xbf16, #tpu.memory_space<vmem>>, vector<16x128xbf16>
    %c0_4 = arith.constant 0 : index
    %c0_5 = arith.constant 0 : index
    %5 = vector.load %arg4[%c0_4, %c0_5] : memref<128x32xbf16, #tpu.memory_space<vmem>>, vector<128x32xbf16>
    %cst = arith.constant dense<0.000000e+00> : vector<16x32xf32>
    %6 = tpu.matmul %4, %5, %cst {dimension_numbers = #tpu.dot_dimension_numbers<[1], [0], [0], [1], [0, 0, 1, 1], [], []>} : vector<16x128xbf16>, vector<128x32xbf16>, vector<16x32xf32> -> vector<16x32xf32>
    %7 = arith.addf %3, %6 : vector<16x32xf32>
    %c0_6 = arith.constant 0 : index
    %c0_7 = arith.constant 0 : index
    %8 = vector.load %arg7[%c0_6, %c0_7] : memref<16x32xf32, #tpu.memory_space<vmem>>, vector<16x32xf32>
    tpu.vector_store %arg7[%c0_6, %c0_7], %7 {strides = array<i32>} : memref<16x32xf32, #tpu.memory_space<vmem>>, vector<16x32xf32>,
    %c0_i32_8 = arith.constant 0 : i32
    %9 = arith.cmpi eq, %arg2, %c0_i32_8 : i32
    %10 = arith.extui %9 : i1 to i32
    %c0_i32_9 = arith.constant 0 : i32
    %11 = arith.cmpi ne, %10, %c0_i32_9 : i32
    scf.if %11 {
      %c0_10 = arith.constant 0 : index
      %c0_11 = arith.constant 0 : index
      %12 = vector.load %arg7[%c0_10, %c0_11] : memref<16x32xf32, #tpu.memory_space<vmem>>, vector<16x32xf32>
      %c0_12 = arith.constant 0 : index
      %c0_13 = arith.constant 0 : index
      %13 = vector.load %arg5[%c0_12, %c0_13] : memref<1x32xf32, #tpu.memory_space<vmem>>, vector<1x32xf32>
      %14 = vector.broadcast %13 : vector<1x32xf32> to vector<16x32xf32>
      %15 = arith.addf %12, %14 : vector<16x32xf32>
      %c0_14 = arith.constant 0 : index
      %c0_15 = arith.constant 0 : index
      %16 = vector.load %arg6[%c0_14, %c0_15] : memref<16x32xf32, #tpu.memory_space<vmem>>, vector<16x32xf32>
      tpu.vector_store %arg6[%c0_14, %c0_15], %15 {strides = array<i32>} : memref<16x32xf32, #tpu.memory_space<vmem>>, vector<16x32xf32>,
    } else {
    }
    return
  }
  func.func @transform_0(%arg0: i32, %arg1: i32, %arg2: i32) -> (i32, i32) {
    %c0_i32 = arith.constant 0 : i32
    return %arg0, %arg2 : i32, i32
  }
  func.func @transform_1(%arg0: i32, %arg1: i32, %arg2: i32) -> (i32, i32) {
    %c0_i32 = arith.constant 0 : i32
    return %arg2, %arg1 : i32, i32
  }
  func.func @transform_2(%arg0: i32, %arg1: i32, %arg2: i32) -> (i32, i32) {
    %c0_i32 = arith.constant 0 : i32
    %c0_i32_0 = arith.constant 0 : i32
    return %c0_i32, %arg1 : i32, i32
  }
  func.func @transform_3(%arg0: i32, %arg1: i32, %arg2: i32) -> (i32, i32) {
    %c0_i32 = arith.constant 0 : i32
    return %arg0, %arg1 : i32, i32
  }
}

</mosaic_0001>

<llo_original>
// kernel: attention_forward.3
$region0: #{attention_forward.3}
  #allocation0 [shape = 'u32[]', space=smem, size = 0x4, offset = 0x4, fixed_abs, tag = 'smem constant byte address 0x4 - core index']
  #allocation1 [shape = 'u32[144,128]{1,0:T(1,128)}', space=vmem, size = 0x12000, scoped, tag = 'internal scratch']
  #allocation2 [shape = 'f32[16,384]{1,0:T(8,128)}', space=vmem, size = 0x6000, scoped, tag = 'scratch operand']
  %s0 = inlined_call_operand.vmem [shape: bf16[16,32], index: 0, kind: input, shape index: {}]
  %s1 = inlined_call_operand.vmem [shape: bf16[32,384], index: 1, kind: input, shape index: {}]
  %s2 = inlined_call_operand.vmem [shape: bf16[16,384], index: 2, kind: output, shape index: {}]
  %s3 = sld [smem:[#allocation0]]
  $region26: #{attention_forward.3} parent=0
    _
  %s5 = ssub.s32 1, %s3
  %s6 = scalar_select 0, %s5, %s3
  // Predicated region
  $region2: #{attention_forward.3} parent=0 // pred_check
    _
  $region3: #{attention_forward.3} parent=0 // pred_check_branch
    %8 = sbr.rel (0) target = $region5
  $region4: #{attention_forward.3} parent=0 // pred_region
    _
  $region5: #{attention_forward.3} parent=0 // pred_fallthru
    _
  // Predicated region
  $region6: #{attention_forward.3} parent=0 // pred_check
    _
  $region7: #{attention_forward.3} parent=0 // pred_check_branch
    %10 = sbr.rel (0) target = $region9
  $region8: #{attention_forward.3} parent=0 // pred_region
    _
  $region9: #{attention_forward.3} parent=0 // pred_fallthru
    _
  %p12 = scmp.eq.s32.totalorder 0, 0
  // Predicated region
  $region10: #{attention_forward.3} parent=0 // pred_check
    %p13 = pneg %p12
  $region11: #{attention_forward.3} parent=0 // pred_check_branch
    %15 = sbr.rel (%p13) target = $region13
  $region12: #{attention_forward.3} parent=0 // pred_region
    %16 = vst [vmem:[#allocation2] sm:$0xff] 0.0
    %17 = vst [vmem:[#allocation2 + $0x8] sm:$0xff] 0.0
    %18 = vst [vmem:[#allocation2 + $0x10] sm:$0xff] 0.0
    %19 = vst [vmem:[#allocation2 + $0x18] sm:$0xff] 0.0
    %20 = vst [vmem:[#allocation2 + $0x20] sm:$0xff] 0.0
    %21 = vst [vmem:[#allocation2 + $0x28] sm:$0xff] 0.0
  $region13: #{attention_forward.3} parent=0 // pred_fallthru
    _
  %v22 = vld [vmem:[#allocation2] sm:$0xff]
  %v23 = vld [vmem:[#allocation2 + $0x8] sm:$0xff]
  %v24 = vld [vmem:[#allocation2 + $0x10] sm:$0xff]
  %v25 = vld [vmem:[#allocation2 + $0x18] sm:$0xff]
  %v26 = vld [vmem:[#allocation2 + $0x20] sm:$0xff]
  %v27 = vld [vmem:[#allocation2 + $0x28] sm:$0xff]
  %v28 = vld [vmem:[%s0] sm:$0xf]
  %v29 = vld [vmem:[%s0 + $0x4] sm:$0xf]
  %v30 = vld [vmem:[%s1] sm:$0xff]
  %v31 = vld [vmem:[%s1 + $0x8] sm:$0xf]
  %v32 = vld [vmem:[%s1 + $0xc] sm:$0xff]
  %v33 = vld [vmem:[%s1 + $0x14] sm:$0xf]
  %v34 = vld [vmem:[%s1 + $0x18] sm:$0xff]
  %v35 = vld [vmem:[%s1 + $0x20] sm:$0xf]
  %v36 = vld [vmem:[%s1 + $0x24] sm:$0xff]
  %v37 = vld [vmem:[%s1 + $0x2c] sm:$0xf]
  %v40 = vunpack.c.l.b16 %v28
  %v41 = vunpack.c.l.b16 %v29
  %v42 = vpack.c.b16 %v41, %v40
  %v51 = vunpack.c.l.b16 %v30
  %v52 = vunpack.c.h.b16 %v30
  %v53 = vunpack.c.l.b16 %v31
  %v54 = vunpack.c.l.b16 %v32
  %v55 = vunpack.c.h.b16 %v32
  %v56 = vunpack.c.l.b16 %v33
  %v57 = vunpack.c.l.b16 %v34
  %v58 = vunpack.c.h.b16 %v34
  %v59 = vunpack.c.l.b16 %v35
  %v60 = vunpack.c.l.b16 %v36
  %v61 = vunpack.c.h.b16 %v36
  %v62 = vunpack.c.l.b16 %v37
  %v63 = vpack.c.b16 %v54, %v51
  %v64 = vpack.c.b16 %v55, %v52
  %v65 = vpack.c.b16 %v56, %v53
  %v66 = vpack.c.b16 %v60, %v57
  %v67 = vpack.c.b16 %v61, %v58
  %v68 = vpack.c.b16 %v62, %v59
  %vm75 = vcmask 261120
  %v77 = vsel %vm75, %v42, 0
  %79 = vmatprep.subr.bf16.mxu0 0
  %80 = vmatpush1.bf16.msra.mxu0 0
  %81 = vmatprep.subr.bf16.mxu0 0
  %82 = vmatpush1.bf16.msra.mxu0 0
  %83 = vmatprep.subr.bf16.mxu0 0
  %84 = vmatpush1.bf16.msra.mxu0 0
  %85 = vmatprep.subr.bf16.mxu0 0
  %86 = vmatpush1.bf16.msra.mxu0 0
  %87 = vmatprep.subr.bf16.mxu0 0
  %88 = vmatpush1.bf16.msra.mxu0 0
  %89 = vmatprep.subr.bf16.mxu0 0
  %90 = vmatpush1.bf16.msra.mxu0 0
  %91 = vmatprep.subr.bf16.mxu0 %v67
  %92 = vmatpush1.bf16.msra.mxu0 %v66
  %93 = vmatprep.subr.bf16.mxu0 %v64
  %94 = vmatpush1.bf16.msra.mxu0 %v63
  %95 = vmatprep.subr.bf16.mxu0 0
  %96 = vmatpush2.bf16.msra.mxu0 0
  %97 = vmatprep.subr.bf16.mxu0 0
  %98 = vmatpush2.bf16.msra.mxu0 0
  %99 = vmatprep.subr.bf16.mxu0 0
  %100 = vmatpush2.bf16.msra.mxu0 0
  %101 = vmatprep.subr.bf16.mxu0 0
  %102 = vmatpush2.bf16.msra.mxu0 0
  %103 = vmatprep.subr.bf16.mxu0 0
  %104 = vmatpush2.bf16.msra.mxu0 0
  %105 = vmatprep.subr.bf16.mxu0 0
  %106 = vmatpush2.bf16.msra.mxu0 0
  %107 = vmatprep.subr.bf16.mxu0 0
  %108 = vmatpush2.bf16.msra.mxu0 0
  %109 = vmatprep.subr.bf16.mxu0 0
  %110 = vmatpush2.bf16.msra.mxu0 0
  %111 = vmatprep.mubr.bf16.mxu0 0
  %112 = vmatmul.mubr.bf16.gmra.mxu0 %v77
  %v113 = vpop.f32.mrf.mxu0
  %v114 = vadd.f32 0.0, %v113
  %v115 = vpop.f32.mrf.mxu0
  %v116 = vadd.f32 0.0, %v115
  %v117 = vpop.f32.mrf.mxu0
  %v118 = vadd.f32 0.0, %v117
  %v119 = vpop.f32.mrf.mxu0
  %v120 = vadd.f32 0.0, %v119
  %121 = vdwg.mxu0
  %122 = vmatprep.subr.bf16.mxu0 0
  %123 = vmatpush1.bf16.msra.mxu0 0
  %124 = vmatprep.subr.bf16.mxu0 0
  %125 = vmatpush1.bf16.msra.mxu0 0
  %126 = vmatprep.subr.bf16.mxu0 0
  %127 = vmatpush1.bf16.msra.mxu0 0
  %128 = vmatprep.subr.bf16.mxu0 0
  %129 = vmatpush1.bf16.msra.mxu0 0
  %130 = vmatprep.subr.bf16.mxu0 0
  %131 = vmatpush1.bf16.msra.mxu0 0
  %132 = vmatprep.subr.bf16.mxu0 0
  %133 = vmatpush1.bf16.msra.mxu0 0
  %134 = vmatprep.subr.bf16.mxu0 0
  %135 = vmatpush1.bf16.msra.mxu0 %v68
  %136 = vmatprep.subr.bf16.mxu0 0
  %137 = vmatpush1.bf16.msra.mxu0 %v65
  %138 = vmatprep.subr.bf16.mxu0 0
  %139 = vmatpush2.bf16.msra.mxu0 0
  %140 = vmatprep.subr.bf16.mxu0 0
  %141 = vmatpush2.bf16.msra.mxu0 0
  %142 = vmatprep.subr.bf16.mxu0 0
  %143 = vmatpush2.bf16.msra.mxu0 0
  %144 = vmatprep.subr.bf16.mxu0 0
  %145 = vmatpush2.bf16.msra.mxu0 0
  %146 = vmatprep.subr.bf16.mxu0 0
  %147 = vmatpush2.bf16.msra.mxu0 0
  %148 = vmatprep.subr.bf16.mxu0 0
  %149 = vmatpush2.bf16.msra.mxu0 0
  %150 = vmatprep.subr.bf16.mxu0 0
  %151 = vmatpush2.bf16.msra.mxu0 0
  %152 = vmatprep.subr.bf16.mxu0 0
  %153 = vmatpush2.bf16.msra.mxu0 0
  %154 = vmatprep.mubr.bf16.mxu0 0
  %155 = vmatmul.mubr.bf16.gmra.mxu0 %v77
  %v156 = vpop.f32.mrf.mxu0
  %v157 = vadd.f32 0.0, %v156
  %v158 = vpop.f32.mrf.mxu0
  %v159 = vpop.f32.mrf.mxu0
  %v160 = vadd.f32 0.0, %v159
  %v161 = vpop.f32.mrf.mxu0
  %162 = vdwg.mxu0
  %v163 = vadd.f32 %v22, %v114
  %v164 = vadd.f32 %v23, %v116
  %v165 = vadd.f32 %v24, %v157
  %v166 = vadd.f32 %v25, %v118
  %v167 = vadd.f32 %v26, %v120
  %v168 = vadd.f32 %v27, %v160
  %169 = vst [vmem:[#allocation2] sm:$0xff] %v163
  %170 = vst [vmem:[#allocation2 + $0x8] sm:$0xff] %v164
  %171 = vst [vmem:[#allocation2 + $0x10] sm:$0xff] %v165
  %172 = vst [vmem:[#allocation2 + $0x18] sm:$0xff] %v166
  %173 = vst [vmem:[#allocation2 + $0x20] sm:$0xff] %v167
  %174 = vst [vmem:[#allocation2 + $0x28] sm:$0xff] %v168
  // Predicated region
  $region14: #{attention_forward.3} parent=0 // pred_check
    %p175 = pneg %p12
  $region15: #{attention_forward.3} parent=0 // pred_check_branch
    %177 = sbr.rel (%p175) target = $region17
  $region16: #{attention_forward.3} parent=0 // pred_region
    %v178 = vld [vmem:[#allocation2] sm:$0xff]
    %v179 = vld [vmem:[#allocation2 + $0x8] sm:$0xff]
    %v180 = vld [vmem:[#allocation2 + $0x10] sm:$0xff]
    %v181 = vld [vmem:[#allocation2 + $0x18] sm:$0xff]
    %v182 = vld [vmem:[#allocation2 + $0x20] sm:$0xff]
    %v183 = vld [vmem:[#allocation2 + $0x28] sm:$0xff]
    %v184 = vpack.c.bf16 %v181, %v178
    %v185 = vpack.c.bf16 %v182, %v179
    %v186 = vpack.c.bf16 %v183, %v180
    %v190 = vunpack.c.l.b16 %v184
    %v191 = vunpack.c.l.b16 %v185
    %v192 = vunpack.c.l.b16 %v186
    %v193 = vunpack.c.h.b16 %v184
    %v194 = vunpack.c.h.b16 %v185
    %v195 = vunpack.c.h.b16 %v186
    %v196 = vpack.c.b16 %v191, %v190
    %v197 = vpack.c.b16 %v192, %v192
    %v198 = vpack.c.b16 %v194, %v193
    %v199 = vpack.c.b16 %v195, %v195
    %204 = vst [vmem:[%s2] sm:$0xff] %v196
    %205 = vst [vmem:[%s2 + $0x8] sm:$0xf] %v197
    %206 = vst [vmem:[%s2 + $0xc] sm:$0xff] %v198
    %207 = vst [vmem:[%s2 + $0x14] sm:$0xf] %v199
  $region17: #{attention_forward.3} parent=0 // pred_fallthru
    _
  // Predicated region
  $region18: #{attention_forward.3} parent=0 // pred_check
    _
  $region19: #{attention_forward.3} parent=0 // pred_check_branch
    %209 = sbr.rel (0) target = $region21
  $region20: #{attention_forward.3} parent=0 // pred_region
    _
  $region21: #{attention_forward.3} parent=0 // pred_fallthru
    _
  // Predicated region
  $region22: #{attention_forward.3} parent=0 // pred_check
    _
  $region23: #{attention_forward.3} parent=0 // pred_check_branch
    %211 = sbr.rel (0) target = $region25
  $region24: #{attention_forward.3} parent=0 // pred_region
    _
  $region25: #{attention_forward.3} parent=0 // pred_fallthru
    _

// kernel: attention_forward.4
$region0: #{attention_forward.4}
  #allocation0 [shape = 'u32[]', space=smem, size = 0x4, offset = 0x4, fixed_abs, tag = 'smem constant byte address 0x4 - core index']
  #allocation1 [shape = 'u32[144,128]{1,0:T(1,128)}', space=vmem, size = 0x12000, scoped, tag = 'internal scratch']
  %s0 = inlined_call_operand.vmem [shape: bf16[2,8,384], index: 0, kind: input, shape index: {}, may-alias: {0,1,2}]
  %s1 = inlined_call_operand.vmem [shape: bf16[2,8,384], index: 1, kind: input, shape index: {}, may-alias: {0,1,2}]
  %s2 = inlined_call_operand.vmem [shape: bf16[2,8,384], index: 2, kind: input, shape index: {}, may-alias: {0,1,2}]
  %s3 = inlined_call_operand.vmem [shape: bf16[2,8,128], index: 3, kind: output, shape index: {}]
  %s4 = sld [smem:[#allocation0]]
  $region45: #{attention_forward.4} parent=0
    _
  %s6 = ssub.s32 1, %s4
  %s7 = scalar_select 0, %s6, %s4
  loop: start=0, step=1, limit=4
  $region2: #{attention_forward.4} parent=0 // loop_pre_header
    _
  $region3: #{attention_forward.4} parent=0 // loop_header
    %s9 = sphi 0, %s13
    %p10 = scmp.ge.s32.totalorder %s9, 4
    %s16 = sphi 0, %s28
    %s17 = sphi 0, %s24
    %s18 = sphi 0, %s16
    %s19 = sphi 0, %s17
    %s20 = sphi 0, %s18
    %s21 = sphi 0, %s19
    %s33 = sphi 0, %s35
    %s36 = sphi 0, %s33
    %s37 = sphi 0, %s36
    %s53 = sphi 0, %s37
    %s59 = sphi 0, %s61
    %s62 = sphi 0, %s59
    %s63 = sphi 0, %s62
    %s79 = sphi 0, %s63
    %s85 = sphi 0, %s87
    %s88 = sphi 0, %s85
    %s89 = sphi 0, %s88
    %s105 = sphi 0, %s89
    %s113 = sphi 0, %s115
    %s116 = sphi 0, %s113
    %s117 = sphi 0, %s116
    %s133 = sphi 0, %s117
  $region4: #{attention_forward.4} parent=0 // loop_header_branch
    %12 = sbr.rel (%p10) target = $region8
  $region5: #{attention_forward.4} parent=0 // loop_body
    %s14 = ssub.s32 %s9, 1
    %s15 = ssub.s32 %s9, 2
    %s22 = sadd.s32 1, %s17
    %p23 = scmp.ge.s32.totalorder %s22, 1
    %s24 = scalar_select %p23, 0, %s22
    %s25 = sadd.s32 1, %s16
    %s26 = scalar_select %p23, %s25, %s16
    %p27 = scmp.ge.s32.totalorder %s26, 2
    %s28 = scalar_select %p27, 0, %s26
    %s29 = ssub.s32 %s16, %s28
    %s30 = ssub.s32 %s17, %s24
    %s31 = sor.u32 %s29, %s30
    %p32 = scmp.eq.s32.totalorder %s31, 0
    %s34 = sadd.s32 %s33, 1
    %s35 = scalar_select %p32, %s33, %s34
    %p38 = pneg %p32
    %p39 = scmp.eq.s32.totalorder %s9, 1
    %p40 = por %p38, %p39
    %p41 = scmp.ne.s32.totalorder %s33, %s36
    %p42 = scmp.eq.s32.totalorder %s9, 0
    %p43 = por %p41, %p42
    %p44 = scmp.ne.s32.totalorder %s33, %s36
    %p45 = scmp.eq.s32.totalorder %s14, 1
    %p46 = por %p44, %p45
    %p47 = scmp.ne.s32.totalorder %s36, %s37
    %p48 = scmp.eq.s32.totalorder %s14, 0
    %p49 = por %p47, %p48
    %p50 = scmp.ne.s32.totalorder %s36, %s37
    %p51 = scmp.eq.s32.totalorder %s15, 1
    %p52 = por %p50, %p51
    %p54 = scmp.ne.s32.totalorder %s37, %s53
    %p55 = scmp.eq.s32.totalorder %s15, 0
    %p56 = por %p54, %p55
    %s57 = ssub.s32 %s16, %s28
    %p58 = scmp.eq.s32.totalorder %s57, 0
    %s60 = sadd.s32 %s59, 1
    %s61 = scalar_select %p58, %s59, %s60
    %p64 = pneg %p58
    %p65 = scmp.eq.s32.totalorder %s9, 1
    %p66 = por %p64, %p65
    %p67 = scmp.ne.s32.totalorder %s59, %s62
    %p68 = scmp.eq.s32.totalorder %s9, 0
    %p69 = por %p67, %p68
    %p70 = scmp.ne.s32.totalorder %s59, %s62
    %p71 = scmp.eq.s32.totalorder %s14, 1
    %p72 = por %p70, %p71
    %p73 = scmp.ne.s32.totalorder %s62, %s63
    %p74 = scmp.eq.s32.totalorder %s14, 0
    %p75 = por %p73, %p74
    %p76 = scmp.ne.s32.totalorder %s62, %s63
    %p77 = scmp.eq.s32.totalorder %s15, 1
    %p78 = por %p76, %p77
    %p80 = scmp.ne.s32.totalorder %s63, %s79
    %p81 = scmp.eq.s32.totalorder %s15, 0
    %p82 = por %p80, %p81
    %s83 = ssub.s32 %s16, %s28
    %p84 = scmp.eq.s32.totalorder %s83, 0
    %s86 = sadd.s32 %s85, 1
    %s87 = scalar_select %p84, %s85, %s86
    %p90 = pneg %p84
    %p91 = scmp.eq.s32.totalorder %s9, 1
    %p92 = por %p90, %p91
    %p93 = scmp.ne.s32.totalorder %s85, %s88
    %p94 = scmp.eq.s32.totalorder %s9, 0
    %p95 = por %p93, %p94
    %p96 = scmp.ne.s32.totalorder %s85, %s88
    %p97 = scmp.eq.s32.totalorder %s14, 1
    %p98 = por %p96, %p97
    %p99 = scmp.ne.s32.totalorder %s88, %s89
    %p100 = scmp.eq.s32.totalorder %s14, 0
    %p101 = por %p99, %p100
    %p102 = scmp.ne.s32.totalorder %s88, %s89
    %p103 = scmp.eq.s32.totalorder %s15, 1
    %p104 = por %p102, %p103
    %p106 = scmp.ne.s32.totalorder %s89, %s105
    %p107 = scmp.eq.s32.totalorder %s15, 0
    %p108 = por %p106, %p107
    %s109 = ssub.s32 %s16, %s28
    %s110 = ssub.s32 %s17, %s24
    %s111 = sor.u32 %s109, %s110
    %p112 = scmp.eq.s32.totalorder %s111, 0
    %s114 = sadd.s32 %s113, 1
    %s115 = scalar_select %p112, %s113, %s114
    %p118 = pneg %p112
    %p119 = scmp.eq.s32.totalorder %s9, 1
    %p120 = por %p118, %p119
    %p121 = scmp.ne.s32.totalorder %s113, %s116
    %p122 = scmp.eq.s32.totalorder %s9, 0
    %p123 = por %p121, %p122
    %p124 = scmp.ne.s32.totalorder %s113, %s116
    %p125 = scmp.eq.s32.totalorder %s14, 1
    %p126 = por %p124, %p125
    %p127 = scmp.ne.s32.totalorder %s116, %s117
    %p128 = scmp.eq.s32.totalorder %s14, 0
    %p129 = por %p127, %p128
    %p130 = scmp.ne.s32.totalorder %s116, %s117
    %p131 = scmp.eq.s32.totalorder %s15, 1
    %p132 = por %p130, %p131
    %p134 = scmp.ne.s32.totalorder %s117, %s133
    %p135 = scmp.eq.s32.totalorder %s15, 0
    %p136 = por %p134, %p135
    %p137 = scmp.le.s32.totalorder 1, %s9
    %p138 = scmp.lt.s32.totalorder %s9, 3
    %p139 = pnand %p137, %p138
    %p140 = pneg %p139
    // Predicated region
    $region9: #{attention_forward.4} parent=5 // pred_check
      _
    $region10: #{attention_forward.4} parent=5 // pred_check_branch
      %142 = sbr.rel (%p139) target = $region12
    $region11: #{attention_forward.4} parent=5 // pred_region
      %s143 = ssub.s32 %s9, 1
    $region12: #{attention_forward.4} parent=5 // pred_fallthru
      _
    %p144 = scmp.lt.s32.totalorder %s9, 2
    // Predicated region
    $region13: #{attention_forward.4} parent=5 // pred_check
      %p145 = pneg %p144
    $region14: #{attention_forward.4} parent=5 // pred_check_branch
      %147 = sbr.rel (%p145) target = $region16
    $region15: #{attention_forward.4} parent=5 // pred_region
      // Predicated region
      $region17: #{attention_forward.4} parent=15 // pred_check
        %p148 = pneg %p43
      $region18: #{attention_forward.4} parent=15 // pred_check_branch
        %150 = sbr.rel (%p148) target = $region20
      $region19: #{attention_forward.4} parent=15 // pred_region
        %p151 = scmp.lt.s32.totalorder %s16, 1
        %s152 = scalar_select %p151, %s16, 1
        %p153 = scmp.lt.s32.totalorder %s17, 0
        %s154 = scalar_select %p153, %s17, 0
        %s155 = smul.addr %s154, 3
        %s156 = smul.addr %s152, 3
        %s157 = sadd.s32 %s155, %s156
        %s158 = smul.addr %s157, 4
        %s159 = scalar_lea.vmem %s0, %s158
      $region20: #{attention_forward.4} parent=15 // pred_fallthru
        _
      // Predicated region
      $region21: #{attention_forward.4} parent=15 // pred_check
        %p160 = pneg %p69
      $region22: #{attention_forward.4} parent=15 // pred_check_branch
        %162 = sbr.rel (%p160) target = $region24
      $region23: #{attention_forward.4} parent=15 // pred_region
        %p163 = scmp.lt.s32.totalorder %s16, 1
        %s164 = scalar_select %p163, %s16, 1
        %s165 = smul.addr %s164, 3
        %s166 = sadd.s32 1, %s165
        %s167 = smul.addr %s166, 4
        %s168 = scalar_lea.vmem %s1, %s167
      $region24: #{attention_forward.4} parent=15 // pred_fallthru
        _
      // Predicated region
      $region25: #{attention_forward.4} parent=15 // pred_check
        %p169 = pneg %p95
      $region26: #{attention_forward.4} parent=15 // pred_check_branch
        %171 = sbr.rel (%p169) target = $region28
      $region27: #{attention_forward.4} parent=15 // pred_region
        %p172 = scmp.lt.s32.totalorder %s16, 1
        %s173 = scalar_select %p172, %s16, 1
        %s174 = smul.addr %s173, 3
        %s175 = sadd.s32 2, %s174
        %s176 = smul.addr %s175, 4
        %s177 = scalar_lea.vmem %s2, %s176
      $region28: #{attention_forward.4} parent=15 // pred_fallthru
        _
    $region16: #{attention_forward.4} parent=5 // pred_fallthru
      _
    %p178 = scmp.le.s32.totalorder 1, %s9
    %p179 = scmp.lt.s32.totalorder %s9, 3
    %p180 = pnand %p178, %p179
    %p181 = pneg %p180
    // Predicated region
    $region29: #{attention_forward.4} parent=5 // pred_check
      _
    $region30: #{attention_forward.4} parent=5 // pred_check_branch
      %183 = sbr.rel (%p180) target = $region32
    $region31: #{attention_forward.4} parent=5 // pred_region
      %s184 = ssub.s32 %s9, 1
      %p185 = scmp.lt.s32.totalorder %s18, 1
      %s186 = scalar_select %p185, %s18, 1
      %p187 = scmp.lt.s32.totalorder %s19, 0
      %s188 = scalar_select %p187, %s19, 0
      %s189 = smul.addr %s188, 3
      %s190 = smul.addr %s186, 3
      %s191 = sadd.s32 %s189, %s190
      %s192 = smul.addr %s191, 4
      %s193 = scalar_lea.vmem %s0, %s192
      %p194 = pneg %p49
      %p195 = pneg %p46
      %p196 = scmp.lt.s32.totalorder %s18, 1
      %s197 = scalar_select %p196, %s18, 1
      %s198 = smul.addr %s197, 3
      %s199 = sadd.s32 1, %s198
      %s200 = smul.addr %s199, 4
      %s201 = scalar_lea.vmem %s1, %s200
      %p202 = pneg %p75
      %p203 = pneg %p72
      %p204 = scmp.lt.s32.totalorder %s18, 1
      %s205 = scalar_select %p204, %s18, 1
      %s206 = smul.addr %s205, 3
      %s207 = sadd.s32 2, %s206
      %s208 = smul.addr %s207, 4
      %s209 = scalar_lea.vmem %s2, %s208
      %p210 = pneg %p101
      %p211 = pneg %p98
      %p212 = pneg %p129
      %p213 = pneg %p126
      %p214 = scmp.lt.s32.totalorder %s18, 1
      %s215 = scalar_select %p214, %s18, 1
      %p216 = scmp.lt.s32.totalorder %s19, 0
      %s217 = scalar_select %p216, %s19, 0
      %s218 = sadd.s32 %s217, %s215
      %s219 = smul.addr %s218, 4
      %s220 = scalar_lea.vmem %s3, %s219
      %p221 = scmp.lt.s32.totalorder %s18, 1
      %s222 = scalar_select %p221, %s18, 1
      %p223 = scmp.lt.s32.totalorder %s19, 0
      %s224 = scalar_select %p223, %s19, 0
      %s225 = smul.addr %s224, 3
      %s226 = smul.addr %s222, 3
      %s227 = sadd.s32 %s225, %s226
      %s228 = smul.addr %s227, 4
      %s229 = scalar_lea.vmem %s0, %s228
      %p230 = scmp.lt.s32.totalorder %s18, 1
      %s231 = scalar_select %p230, %s18, 1
      %s232 = smul.addr %s231, 3
      %s233 = sadd.s32 1, %s232
      %s234 = smul.addr %s233, 4
      %s235 = scalar_lea.vmem %s1, %s234
      %p236 = scmp.lt.s32.totalorder %s18, 1
      %s237 = scalar_select %p236, %s18, 1
      %s238 = smul.addr %s237, 3
      %s239 = sadd.s32 2, %s238
      %s240 = smul.addr %s239, 4
      %s241 = scalar_lea.vmem %s2, %s240
      %p242 = scmp.lt.s32.totalorder %s18, 1
      %s243 = scalar_select %p242, %s18, 1
      %p244 = scmp.lt.s32.totalorder %s19, 0
      %s245 = scalar_select %p244, %s19, 0
      %s246 = sadd.s32 %s245, %s243
      %s247 = smul.addr %s246, 4
      %s248 = scalar_lea.vmem %s3, %s247
      %v250 = vld [vmem:[%s229] sm:$0xf]
      %v251 = vld [vmem:[%s235] sm:$0xf]
      %v252 = vld [vmem:[%s241] sm:$0xf]
      %vm253 = vcmask 261120
      %v255 = vsel %vm253, %v250, 0
      %v258 = vsel %vm253, %v251, 0
      %260 = vmatprep.subr.bf16.mxu0 0
      %261 = vmatpush1.bf16.xpose.msra.mxu0 0
      %262 = vmatprep.subr.bf16.mxu0 0
      %263 = vmatpush1.bf16.xpose.msra.mxu0 0
      %264 = vmatprep.subr.bf16.mxu0 0
      %265 = vmatpush1.bf16.xpose.msra.mxu0 0
      %266 = vmatprep.subr.bf16.mxu0 0
      %267 = vmatpush1.bf16.xpose.msra.mxu0 0
      %268 = vmatprep.subr.bf16.mxu0 0
      %269 = vmatpush1.bf16.xpose.msra.mxu0 0
      %270 = vmatprep.subr.bf16.mxu0 0
      %271 = vmatpush1.bf16.xpose.msra.mxu0 0
      %272 = vmatprep.subr.bf16.mxu0 0
      %273 = vmatpush1.bf16.xpose.msra.mxu0 0
      %274 = vmatprep.subr.bf16.mxu0 0
      %275 = vmatpush1.bf16.xpose.msra.mxu0 %v258
      %276 = vmatprep.subr.bf16.mxu0 0
      %277 = vmatpush2.bf16.xpose.msra.mxu0 0
      %278 = vmatprep.subr.bf16.mxu0 0
      %279 = vmatpush2.bf16.xpose.msra.mxu0 0
      %280 = vmatprep.subr.bf16.mxu0 0
      %281 = vmatpush2.bf16.xpose.msra.mxu0 0
      %282 = vmatprep.subr.bf16.mxu0 0
      %283 = vmatpush2.bf16.xpose.msra.mxu0 0
      %284 = vmatprep.subr.bf16.mxu0 0
      %285 = vmatpush2.bf16.xpose.msra.mxu0 0
      %286 = vmatprep.subr.bf16.mxu0 0
      %287 = vmatpush2.bf16.xpose.msra.mxu0 0
      %288 = vmatprep.subr.bf16.mxu0 0
      %289 = vmatpush2.bf16.xpose.msra.mxu0 0
      %290 = vmatprep.subr.bf16.mxu0 0
      %291 = vmatpush2.bf16.xpose.msra.mxu0 0
      %292 = vmatprep.mubr.bf16.mxu0 0
      %293 = vmatmul.mubr.bf16.gmra.mxu0 %v255
      %v294 = vpop.f32.mrf.mxu0
      %v295 = vadd.f32 0.0, %v294
      %v296 = vpop.f32.mrf.mxu0
      %v297 = vpop.f32.mrf.mxu0
      %v298 = vpop.f32.mrf.mxu0
      %299 = vdwg.mxu0
      %vm300 = vcmask 64512
      %v301 = vsel %vm300, %v295, -inf
      %302 = vmax.xlane.f32.xlu0 %v301
      %v303 = vpop.xlane.xlu0 %302
      %v304 = vsub.f32 %v295, %v303
      %v305 = vmul.f32 %v304, 1.442695
      %v306 = vpow.pop %v305
      %v307 = vsel %vm300, %v306, 0.0
      %308 = vadd.xlane.f32.xlu0 %v307
      %v309 = vpop.xlane.xlu0 %308
      %v310 = vrcp.pop %v309
      %v311 = vmul.f32 %v306, %v310
      %v312 = vpack.c.bf16 %v311, %v311
      %v314 = vsel %vm300, %v312, 0
      %vm316 = vcmask 1043456
      %v318 = vsel %vm316, %v252, 0
      %320 = vmatprep.subr.bf16.mxu0 0
      %321 = vmatpush1.bf16.msra.mxu0 0
      %322 = vmatprep.subr.bf16.mxu0 0
      %323 = vmatpush1.bf16.msra.mxu0 0
      %324 = vmatprep.subr.bf16.mxu0 0
      %325 = vmatpush1.bf16.msra.mxu0 0
      %326 = vmatprep.subr.bf16.mxu0 0
      %327 = vmatpush1.bf16.msra.mxu0 0
      %328 = vmatprep.subr.bf16.mxu0 0
      %329 = vmatpush1.bf16.msra.mxu0 0
      %330 = vmatprep.subr.bf16.mxu0 0
      %331 = vmatpush1.bf16.msra.mxu0 0
      %332 = vmatprep.subr.bf16.mxu0 0
      %333 = vmatpush1.bf16.msra.mxu0 0
      %334 = vmatprep.subr.bf16.mxu0 0
      %335 = vmatpush1.bf16.msra.mxu0 %v318
      %336 = vmatprep.subr.bf16.mxu0 0
      %337 = vmatpush2.bf16.msra.mxu0 0
      %338 = vmatprep.subr.bf16.mxu0 0
      %339 = vmatpush2.bf16.msra.mxu0 0
      %340 = vmatprep.subr.bf16.mxu0 0
      %341 = vmatpush2.bf16.msra.mxu0 0
      %342 = vmatprep.subr.bf16.mxu0 0
      %343 = vmatpush2.bf16.msra.mxu0 0
      %344 = vmatprep.subr.bf16.mxu0 0
      %345 = vmatpush2.bf16.msra.mxu0 0
      %346 = vmatprep.subr.bf16.mxu0 0
      %347 = vmatpush2.bf16.msra.mxu0 0
      %348 = vmatprep.subr.bf16.mxu0 0
      %349 = vmatpush2.bf16.msra.mxu0 0
      %350 = vmatprep.subr.bf16.mxu0 0
      %351 = vmatpush2.bf16.msra.mxu0 0
      %352 = vmatprep.mubr.bf16.mxu0 0
      %353 = vmatmul.mubr.bf16.gmra.mxu0 %v314
      %v354 = vpop.f32.mrf.mxu0
      %v355 = vadd.f32 0.0, %v354
      %v356 = vpop.f32.mrf.mxu0
      %v357 = vpop.f32.mrf.mxu0
      %v358 = vpop.f32.mrf.mxu0
      %359 = vdwg.mxu0
      %v361 = vunpack.c.l.b16 %v250
      %v362 = vpack.c.b16 %v361, %v361
      %363 = vrot.lane.b32.xlu0 %v362, 96
      %v364 = vpop.permute.xlu0 %363
      %v366 = vunpack.c.l.b16 %v251
      %v367 = vpack.c.b16 %v366, %v366
      %368 = vrot.lane.b32.xlu0 %v367, 96
      %v369 = vpop.permute.xlu0 %368
      %v371 = vsel %vm253, %v364, 0
      %v374 = vsel %vm253, %v369, 0
      %376 = vmatprep.subr.bf16.mxu0 0
      %377 = vmatpush1.bf16.xpose.msra.mxu0 0
      %378 = vmatprep.subr.bf16.mxu0 0
      %379 = vmatpush1.bf16.xpose.msra.mxu0 0
      %380 = vmatprep.subr.bf16.mxu0 0
      %381 = vmatpush1.bf16.xpose.msra.mxu0 0
      %382 = vmatprep.subr.bf16.mxu0 0
      %383 = vmatpush1.bf16.xpose.msra.mxu0 0
      %384 = vmatprep.subr.bf16.mxu0 0
      %385 = vmatpush1.bf16.xpose.msra.mxu0 0
      %386 = vmatprep.subr.bf16.mxu0 0
      %387 = vmatpush1.bf16.xpose.msra.mxu0 0
      %388 = vmatprep.subr.bf16.mxu0 0
      %389 = vmatpush1.bf16.xpose.msra.mxu0 0
      %390 = vmatprep.subr.bf16.mxu0 0
      %391 = vmatpush1.bf16.xpose.msra.mxu0 %v374
      %392 = vmatprep.subr.bf16.mxu0 0
      %393 = vmatpush2.bf16.xpose.msra.mxu0 0
      %394 = vmatprep.subr.bf16.mxu0 0
      %395 = vmatpush2.bf16.xpose.msra.mxu0 0
      %396 = vmatprep.subr.bf16.mxu0 0
      %397 = vmatpush2.bf16.xpose.msra.mxu0 0
      %398 = vmatprep.subr.bf16.mxu0 0
      %399 = vmatpush2.bf16.xpose.msra.mxu0 0
      %400 = vmatprep.subr.bf16.mxu0 0
      %401 = vmatpush2.bf16.xpose.msra.mxu0 0
      %402 = vmatprep.subr.bf16.mxu0 0
      %403 = vmatpush2.bf16.xpose.msra.mxu0 0
      %404 = vmatprep.subr.bf16.mxu0 0
      %405 = vmatpush2.bf16.xpose.msra.mxu0 0
      %406 = vmatprep.subr.bf16.mxu0 0
      %407 = vmatpush2.bf16.xpose.msra.mxu0 0
      %408 = vmatprep.mubr.bf16.mxu0 0
      %409 = vmatmul.mubr.bf16.gmra.mxu0 %v371
      %v410 = vpop.f32.mrf.mxu0
      %v411 = vadd.f32 0.0, %v410
      %v412 = vpop.f32.mrf.mxu0
      %v413 = vpop.f32.mrf.mxu0
      %v414 = vpop.f32.mrf.mxu0
      %415 = vdwg.mxu0
      %v416 = vsel %vm300, %v411, -inf
      %417 = vmax.xlane.f32.xlu0 %v416
      %v418 = vpop.xlane.xlu0 %417
      %v419 = vsub.f32 %v411, %v418
      %v420 = vmul.f32 %v419, 1.442695
      %v421 = vpow.pop %v420
      %v422 = vsel %vm300, %v421, 0.0
      %423 = vadd.xlane.f32.xlu0 %v422
      %v424 = vpop.xlane.xlu0 %423
      %v425 = vrcp.pop %v424
      %v426 = vmul.f32 %v421, %v425
      %v427 = vpack.c.bf16 %v426, %v426
      %v429 = vunpack.c.l.b16 %v252
      %v430 = vpack.c.b16 %v429, %v429
      %431 = vrot.lane.b32.xlu0 %v430, 96
      %v432 = vpop.permute.xlu0 %431
      %v434 = vsel %vm300, %v427, 0
      %v437 = vsel %vm316, %v432, 0
      %439 = vmatprep.subr.bf16.mxu0 0
      %440 = vmatpush1.bf16.msra.mxu0 0
      %441 = vmatprep.subr.bf16.mxu0 0
      %442 = vmatpush1.bf16.msra.mxu0 0
      %443 = vmatprep.subr.bf16.mxu0 0
      %444 = vmatpush1.bf16.msra.mxu0 0
      %445 = vmatprep.subr.bf16.mxu0 0
      %446 = vmatpush1.bf16.msra.mxu0 0
      %447 = vmatprep.subr.bf16.mxu0 0
      %448 = vmatpush1.bf16.msra.mxu0 0
      %449 = vmatprep.subr.bf16.mxu0 0
      %450 = vmatpush1.bf16.msra.mxu0 0
      %451 = vmatprep.subr.bf16.mxu0 0
      %452 = vmatpush1.bf16.msra.mxu0 0
      %453 = vmatprep.subr.bf16.mxu0 0
      %454 = vmatpush1.bf16.msra.mxu0 %v437
      %455 = vmatprep.subr.bf16.mxu0 0
      %456 = vmatpush2.bf16.msra.mxu0 0
      %457 = vmatprep.subr.bf16.mxu0 0
      %458 = vmatpush2.bf16.msra.mxu0 0
      %459 = vmatprep.subr.bf16.mxu0 0
      %460 = vmatpush2.bf16.msra.mxu0 0
      %461 = vmatprep.subr.bf16.mxu0 0
      %462 = vmatpush2.bf16.msra.mxu0 0
      %463 = vmatprep.subr.bf16.mxu0 0
      %464 = vmatpush2.bf16.msra.mxu0 0
      %465 = vmatprep.subr.bf16.mxu0 0
      %466 = vmatpush2.bf16.msra.mxu0 0
      %467 = vmatprep.subr.bf16.mxu0 0
      %468 = vmatpush2.bf16.msra.mxu0 0
      %469 = vmatprep.subr.bf16.mxu0 0
      %470 = vmatpush2.bf16.msra.mxu0 0
      %471 = vmatprep.mubr.bf16.mxu0 0
      %472 = vmatmul.mubr.bf16.gmra.mxu0 %v434
      %v473 = vpop.f32.mrf.mxu0
      %v474 = vadd.f32 0.0, %v473
      %v475 = vpop.f32.mrf.mxu0
      %v476 = vpop.f32.mrf.mxu0
      %v477 = vpop.f32.mrf.mxu0
      %478 = vdwg.mxu0
      %479 = vrot.lane.b32.xlu0 %v362, 64
      %v480 = vpop.permute.xlu0 %479
      %481 = vrot.lane.b32.xlu0 %v367, 64
      %v482 = vpop.permute.xlu0 %481
      %v484 = vsel %vm253, %v480, 0
      %v487 = vsel %vm253, %v482, 0
      %489 = vmatprep.subr.bf16.mxu0 0
      %490 = vmatpush1.bf16.xpose.msra.mxu0 0
      %491 = vmatprep.subr.bf16.mxu0 0
      %492 = vmatpush1.bf16.xpose.msra.mxu0 0
      %493 = vmatprep.subr.bf16.mxu0 0
      %494 = vmatpush1.bf16.xpose.msra.mxu0 0
      %495 = vmatprep.subr.bf16.mxu0 0
      %496 = vmatpush1.bf16.xpose.msra.mxu0 0
      %497 = vmatprep.subr.bf16.mxu0 0
      %498 = vmatpush1.bf16.xpose.msra.mxu0 0
      %499 = vmatprep.subr.bf16.mxu0 0
      %500 = vmatpush1.bf16.xpose.msra.mxu0 0
      %501 = vmatprep.subr.bf16.mxu0 0
      %502 = vmatpush1.bf16.xpose.msra.mxu0 0
      %503 = vmatprep.subr.bf16.mxu0 0
      %504 = vmatpush1.bf16.xpose.msra.mxu0 %v487
      %505 = vmatprep.subr.bf16.mxu0 0
      %506 = vmatpush2.bf16.xpose.msra.mxu0 0
      %507 = vmatprep.subr.bf16.mxu0 0
      %508 = vmatpush2.bf16.xpose.msra.mxu0 0
      %509 = vmatprep.subr.bf16.mxu0 0
      %510 = vmatpush2.bf16.xpose.msra.mxu0 0
      %511 = vmatprep.subr.bf16.mxu0 0
      %512 = vmatpush2.bf16.xpose.msra.mxu0 0
      %513 = vmatprep.subr.bf16.mxu0 0
      %514 = vmatpush2.bf16.xpose.msra.mxu0 0
      %515 = vmatprep.subr.bf16.mxu0 0
      %516 = vmatpush2.bf16.xpose.msra.mxu0 0
      %517 = vmatprep.subr.bf16.mxu0 0
      %518 = vmatpush2.bf16.xpose.msra.mxu0 0
      %519 = vmatprep.subr.bf16.mxu0 0
      %520 = vmatpush2.bf16.xpose.msra.mxu0 0
      %521 = vmatprep.mubr.bf16.mxu0 0
      %522 = vmatmul.mubr.bf16.gmra.mxu0 %v484
      %v523 = vpop.f32.mrf.mxu0
      %v524 = vadd.f32 0.0, %v523
      %v525 = vpop.f32.mrf.mxu0
      %v526 = vpop.f32.mrf.mxu0
      %v527 = vpop.f32.mrf.mxu0
      %528 = vdwg.mxu0
      %v529 = vsel %vm300, %v524, -inf
      %530 = vmax.xlane.f32.xlu0 %v529
      %v531 = vpop.xlane.xlu0 %530
      %v532 = vsub.f32 %v524, %v531
      %v533 = vmul.f32 %v532, 1.442695
      %v534 = vpow.pop %v533
      %v535 = vsel %vm300, %v534, 0.0
      %536 = vadd.xlane.f32.xlu0 %v535
      %v537 = vpop.xlane.xlu0 %536
      %v538 = vrcp.pop %v537
      %v539 = vmul.f32 %v534, %v538
      %v540 = vpack.c.bf16 %v539, %v539
      %541 = vrot.lane.b32.xlu0 %v430, 64
      %v542 = vpop.permute.xlu0 %541
      %v544 = vsel %vm300, %v540, 0
      %v547 = vsel %vm316, %v542, 0
      %549 = vmatprep.subr.bf16.mxu0 0
      %550 = vmatpush1.bf16.msra.mxu0 0
      %551 = vmatprep.subr.bf16.mxu0 0
      %552 = vmatpush1.bf16.msra.mxu0 0
      %553 = vmatprep.subr.bf16.mxu0 0
      %554 = vmatpush1.bf16.msra.mxu0 0
      %555 = vmatprep.subr.bf16.mxu0 0
      %556 = vmatpush1.bf16.msra.mxu0 0
      %557 = vmatprep.subr.bf16.mxu0 0
      %558 = vmatpush1.bf16.msra.mxu0 0
      %559 = vmatprep.subr.bf16.mxu0 0
      %560 = vmatpush1.bf16.msra.mxu0 0
      %561 = vmatprep.subr.bf16.mxu0 0
      %562 = vmatpush1.bf16.msra.mxu0 0
      %563 = vmatprep.subr.bf16.mxu0 0
      %564 = vmatpush1.bf16.msra.mxu0 %v547
      %565 = vmatprep.subr.bf16.mxu0 0
      %566 = vmatpush2.bf16.msra.mxu0 0
      %567 = vmatprep.subr.bf16.mxu0 0
      %568 = vmatpush2.bf16.msra.mxu0 0
      %569 = vmatprep.subr.bf16.mxu0 0
      %570 = vmatpush2.bf16.msra.mxu0 0
      %571 = vmatprep.subr.bf16.mxu0 0
      %572 = vmatpush2.bf16.msra.mxu0 0
      %573 = vmatprep.subr.bf16.mxu0 0
      %574 = vmatpush2.bf16.msra.mxu0 0
      %575 = vmatprep.subr.bf16.mxu0 0
      %576 = vmatpush2.bf16.msra.mxu0 0
      %577 = vmatprep.subr.bf16.mxu0 0
      %578 = vmatpush2.bf16.msra.mxu0 0
      %579 = vmatprep.subr.bf16.mxu0 0
      %580 = vmatpush2.bf16.msra.mxu0 0
      %581 = vmatprep.mubr.bf16.mxu0 0
      %582 = vmatmul.mubr.bf16.gmra.mxu0 %v544
      %v583 = vpop.f32.mrf.mxu0
      %v584 = vadd.f32 0.0, %v583
      %v585 = vpop.f32.mrf.mxu0
      %v586 = vpop.f32.mrf.mxu0
      %v587 = vpop.f32.mrf.mxu0
      %588 = vdwg.mxu0
      %589 = vrot.lane.b32.xlu0 %v362, 32
      %v590 = vpop.permute.xlu0 %589
      %591 = vrot.lane.b32.xlu0 %v367, 32
      %v592 = vpop.permute.xlu0 %591
      %v594 = vsel %vm253, %v590, 0
      %v597 = vsel %vm253, %v592, 0
      %599 = vmatprep.subr.bf16.mxu0 0
      %600 = vmatpush1.bf16.xpose.msra.mxu0 0
      %601 = vmatprep.subr.bf16.mxu0 0
      %602 = vmatpush1.bf16.xpose.msra.mxu0 0
      %603 = vmatprep.subr.bf16.mxu0 0
      %604 = vmatpush1.bf16.xpose.msra.mxu0 0
      %605 = vmatprep.subr.bf16.mxu0 0
      %606 = vmatpush1.bf16.xpose.msra.mxu0 0
      %607 = vmatprep.subr.bf16.mxu0 0
      %608 = vmatpush1.bf16.xpose.msra.mxu0 0
      %609 = vmatprep.subr.bf16.mxu0 0
      %610 = vmatpush1.bf16.xpose.msra.mxu0 0
      %611 = vmatprep.subr.bf16.mxu0 0
      %612 = vmatpush1.bf16.xpose.msra.mxu0 0
      %613 = vmatprep.subr.bf16.mxu0 0
      %614 = vmatpush1.bf16.xpose.msra.mxu0 %v597
      %615 = vmatprep.subr.bf16.mxu0 0
      %616 = vmatpush2.bf16.xpose.msra.mxu0 0
      %617 = vmatprep.subr.bf16.mxu0 0
      %618 = vmatpush2.bf16.xpose.msra.mxu0 0
      %619 = vmatprep.subr.bf16.mxu0 0
      %620 = vmatpush2.bf16.xpose.msra.mxu0 0
      %621 = vmatprep.subr.bf16.mxu0 0
      %622 = vmatpush2.bf16.xpose.msra.mxu0 0
      %623 = vmatprep.subr.bf16.mxu0 0
      %624 = vmatpush2.bf16.xpose.msra.mxu0 0
      %625 = vmatprep.subr.bf16.mxu0 0
      %626 = vmatpush2.bf16.xpose.msra.mxu0 0
      %627 = vmatprep.subr.bf16.mxu0 0
      %628 = vmatpush2.bf16.xpose.msra.mxu0 0
      %629 = vmatprep.subr.bf16.mxu0 0
      %630 = vmatpush2.bf16.xpose.msra.mxu0 0
      %631 = vmatprep.mubr.bf16.mxu0 0
      %632 = vmatmul.mubr.bf16.gmra.mxu0 %v594
      %v633 = vpop.f32.mrf.mxu0
      %v634 = vadd.f32 0.0, %v633
      %v635 = vpop.f32.mrf.mxu0
      %v636 = vpop.f32.mrf.mxu0
      %v637 = vpop.f32.mrf.mxu0
      %638 = vdwg.mxu0
      %v639 = vsel %vm300, %v634, -inf
      %640 = vmax.xlane.f32.xlu0 %v639
      %v641 = vpop.xlane.xlu0 %640
      %v642 = vsub.f32 %v634, %v641
      %v643 = vmul.f32 %v642, 1.442695
      %v644 = vpow.pop %v643
      %v645 = vsel %vm300, %v644, 0.0
      %646 = vadd.xlane.f32.xlu0 %v645
      %v647 = vpop.xlane.xlu0 %646
      %v648 = vrcp.pop %v647
      %v649 = vmul.f32 %v644, %v648
      %v650 = vpack.c.bf16 %v649, %v649
      %651 = vrot.lane.b32.xlu0 %v430, 32
      %v652 = vpop.permute.xlu0 %651
      %v654 = vsel %vm300, %v650, 0
      %v657 = vsel %vm316, %v652, 0
      %659 = vmatprep.subr.bf16.mxu0 0
      %660 = vmatpush1.bf16.msra.mxu0 0
      %661 = vmatprep.subr.bf16.mxu0 0
      %662 = vmatpush1.bf16.msra.mxu0 0
      %663 = vmatprep.subr.bf16.mxu0 0
      %664 = vmatpush1.bf16.msra.mxu0 0
      %665 = vmatprep.subr.bf16.mxu0 0
      %666 = vmatpush1.bf16.msra.mxu0 0
      %667 = vmatprep.subr.bf16.mxu0 0
      %668 = vmatpush1.bf16.msra.mxu0 0
      %669 = vmatprep.subr.bf16.mxu0 0
      %670 = vmatpush1.bf16.msra.mxu0 0
      %671 = vmatprep.subr.bf16.mxu0 0
      %672 = vmatpush1.bf16.msra.mxu0 0
      %673 = vmatprep.subr.bf16.mxu0 0
      %674 = vmatpush1.bf16.msra.mxu0 %v657
      %675 = vmatprep.subr.bf16.mxu0 0
      %676 = vmatpush2.bf16.msra.mxu0 0
      %677 = vmatprep.subr.bf16.mxu0 0
      %678 = vmatpush2.bf16.msra.mxu0 0
      %679 = vmatprep.subr.bf16.mxu0 0
      %680 = vmatpush2.bf16.msra.mxu0 0
      %681 = vmatprep.subr.bf16.mxu0 0
      %682 = vmatpush2.bf16.msra.mxu0 0
      %683 = vmatprep.subr.bf16.mxu0 0
      %684 = vmatpush2.bf16.msra.mxu0 0
      %685 = vmatprep.subr.bf16.mxu0 0
      %686 = vmatpush2.bf16.msra.mxu0 0
      %687 = vmatprep.subr.bf16.mxu0 0
      %688 = vmatpush2.bf16.msra.mxu0 0
      %689 = vmatprep.subr.bf16.mxu0 0
      %690 = vmatpush2.bf16.msra.mxu0 0
      %691 = vmatprep.mubr.bf16.mxu0 0
      %692 = vmatmul.mubr.bf16.gmra.mxu0 %v654
      %v693 = vpop.f32.mrf.mxu0
      %v694 = vadd.f32 0.0, %v693
      %v695 = vpop.f32.mrf.mxu0
      %v696 = vpop.f32.mrf.mxu0
      %v697 = vpop.f32.mrf.mxu0
      %698 = vdwg.mxu0
      %700 = vrot.lane.b32.xlu0 %v474, 32
      %v701 = vpop.permute.xlu0 %700
      %704 = vrot.lane.b32.xlu0 %v584, 64
      %v705 = vpop.permute.xlu0 %704
      %708 = vrot.lane.b32.xlu0 %v694, 96
      %v709 = vpop.permute.xlu0 %708
      %v711 = vsel %vm253, %v355, %v701
      %vm712 = vcmask 523264
      %v713 = vsel %vm712, %v711, %v705
      %vm714 = vcmask 785408
      %v715 = vsel %vm714, %v713, %v709
      %v716 = vpack.c.bf16 %v715, %v715
      %717 = vst [vmem:[%s248] sm:$0xf] %v716
      %p718 = scmp.lt.s32.totalorder %s18, 1
      %s719 = scalar_select %p718, %s18, 1
      %p720 = scmp.lt.s32.totalorder %s19, 0
      %s721 = scalar_select %p720, %s19, 0
      %s722 = sadd.s32 %s721, %s719
      %s723 = smul.addr %s722, 4
      %s724 = scalar_lea.vmem %s3, %s723
      // Predicated region
      $region33: #{attention_forward.4} parent=31 // pred_check
        %p725 = pneg %p126
      $region34: #{attention_forward.4} parent=31 // pred_check_branch
        %727 = sbr.rel (%p725) target = $region36
      $region35: #{attention_forward.4} parent=31 // pred_region
        _
      $region36: #{attention_forward.4} parent=31 // pred_fallthru
        _
    $region32: #{attention_forward.4} parent=5 // pred_fallthru
      _
    %p728 = scmp.le.s32.totalorder 2, %s9
    // Predicated region
    $region37: #{attention_forward.4} parent=5 // pred_check
      %p729 = pneg %p728
    $region38: #{attention_forward.4} parent=5 // pred_check_branch
      %731 = sbr.rel (%p729) target = $region40
    $region39: #{attention_forward.4} parent=5 // pred_region
      %s732 = ssub.s32 %s9, 2
      // Predicated region
      $region41: #{attention_forward.4} parent=39 // pred_check
        %p733 = pneg %p132
      $region42: #{attention_forward.4} parent=39 // pred_check_branch
        %735 = sbr.rel (%p733) target = $region44
      $region43: #{attention_forward.4} parent=39 // pred_region
        %p736 = scmp.lt.s32.totalorder %s20, 1
        %s737 = scalar_select %p736, %s20, 1
        %p738 = scmp.lt.s32.totalorder %s21, 0
        %s739 = scalar_select %p738, %s21, 0
        %s740 = sadd.s32 %s739, %s737
        %s741 = smul.addr %s740, 4
        %s742 = scalar_lea.vmem %s3, %s741
      $region44: #{attention_forward.4} parent=39 // pred_fallthru
        _
    $region40: #{attention_forward.4} parent=5 // pred_fallthru
      _
  $region6: #{attention_forward.4} parent=0 // loop_footer
    %s13 = sadd.s32 1, %s9
  $region7: #{attention_forward.4} parent=0 // loop_footer_branch
    %8 = sbr.rel target = $region3
  $region8: #{attention_forward.4} parent=0 // loop_exit
    _

// kernel: attention_forward.5
$region0: #{attention_forward.5}
  #allocation0 [shape = 'u32[]', space=smem, size = 0x4, offset = 0x4, fixed_abs, tag = 'smem constant byte address 0x4 - core index']
  #allocation1 [shape = 'u32[144,128]{1,0:T(1,128)}', space=vmem, size = 0x12000, scoped, tag = 'internal scratch']
  #allocation2 [shape = 'f32[16,32]{1,0:T(8,128)}', space=vmem, size = 0x2000, scoped, tag = 'scratch operand']
  %s0 = inlined_call_operand.vmem [shape: bf16[16,128], index: 0, kind: input, shape index: {}]
  %s1 = inlined_call_operand.vmem [shape: bf16[128,32], index: 1, kind: input, shape index: {}]
  %s2 = inlined_call_operand.vmem [shape: f32[1,32], index: 2, kind: input, shape index: {}]
  %s3 = inlined_call_operand.hbm [shape: f32[16,32], index: 3, kind: output, shape index: {}]
  %s4 = sld [smem:[#allocation0]]
  $region30: #{attention_forward.5} parent=0
    _
  %s6 = ssub.s32 1, %s4
  %s7 = scalar_select 0, %s6, %s4
  $region1: #{attention_forward.5} parent=0
    #allocation3 [shape = 'u8[8192]{0}', space=vmem, size = 0x2000, scoped, tag = 'output window, operand 0, single buffered']
    #allocation4 [shape = 's32[1]{0}', space=sflag, size = 0x4, scoped, tag = 'scoped memory for attention_forward.5']
    %8 = vsyncpa [#allocation4], 0
    // Predicated region
    $region2: #{attention_forward.5} parent=1 // pred_check
      _
    $region3: #{attention_forward.5} parent=1 // pred_check_branch
      %10 = sbr.rel (0) target = $region5
    $region4: #{attention_forward.5} parent=1 // pred_region
      _
    $region5: #{attention_forward.5} parent=1 // pred_fallthru
      _
    // Predicated region
    $region6: #{attention_forward.5} parent=1 // pred_check
      _
    $region7: #{attention_forward.5} parent=1 // pred_check_branch
      %12 = sbr.rel (0) target = $region9
    $region8: #{attention_forward.5} parent=1 // pred_region
      _
    $region9: #{attention_forward.5} parent=1 // pred_fallthru
      _
    // Predicated region
    $region10: #{attention_forward.5} parent=1 // pred_check
      _
    $region11: #{attention_forward.5} parent=1 // pred_check_branch
      %14 = sbr.rel (0) target = $region13
    $region12: #{attention_forward.5} parent=1 // pred_region
      _
    $region13: #{attention_forward.5} parent=1 // pred_fallthru
      _
    %p16 = scmp.eq.s32.totalorder 0, 0
    // Predicated region
    $region14: #{attention_forward.5} parent=1 // pred_check
      %p17 = pneg %p16
    $region15: #{attention_forward.5} parent=1 // pred_check_branch
      %19 = sbr.rel (%p17) target = $region17
    $region16: #{attention_forward.5} parent=1 // pred_region
      %vm20 = vcmask 261120
      %21 = vst.msk [vmem:[#allocation2] sm:$0xff] %vm20, 0.0
      %22 = vst.msk [vmem:[#allocation2 + $0x8] sm:$0xff] %vm20, 0.0
    $region17: #{attention_forward.5} parent=1 // pred_fallthru
      _
    %v23 = vld [vmem:[#allocation2] sm:$0xff]
    %v24 = vld [vmem:[#allocation2 + $0x8] sm:$0xff]
    %v25 = vld [vmem:[%s0] sm:$0xf]
    %v26 = vld [vmem:[%s0 + $0x4] sm:$0xf]
    %v27 = vld [vmem:[%s1] sm:$0xf]
    %v28 = vld [vmem:[%s1 + $0x4] sm:$0xf]
    %v29 = vld [vmem:[%s1 + $0x8] sm:$0xf]
    %v30 = vld [vmem:[%s1 + $0xc] sm:$0xf]
    %v31 = vld [vmem:[%s1 + $0x10] sm:$0xf]
    %v32 = vld [vmem:[%s1 + $0x14] sm:$0xf]
    %v33 = vld [vmem:[%s1 + $0x18] sm:$0xf]
    %v34 = vld [vmem:[%s1 + $0x1c] sm:$0xf]
    %v35 = vld [vmem:[%s1 + $0x20] sm:$0xf]
    %v36 = vld [vmem:[%s1 + $0x24] sm:$0xf]
    %v37 = vld [vmem:[%s1 + $0x28] sm:$0xf]
    %v38 = vld [vmem:[%s1 + $0x2c] sm:$0xf]
    %v39 = vld [vmem:[%s1 + $0x30] sm:$0xf]
    %v40 = vld [vmem:[%s1 + $0x34] sm:$0xf]
    %v41 = vld [vmem:[%s1 + $0x38] sm:$0xf]
    %v42 = vld [vmem:[%s1 + $0x3c] sm:$0xf]
    %v45 = vunpack.c.l.b16 %v25
    %v46 = vunpack.c.l.b16 %v26
    %v47 = vpack.c.b16 %v46, %v45
    %v65 = vunpack.c.l.b16 %v27
    %v66 = vunpack.c.l.b16 %v28
    %v67 = vunpack.c.l.b16 %v29
    %v68 = vunpack.c.l.b16 %v30
    %v69 = vunpack.c.l.b16 %v31
    %v70 = vunpack.c.l.b16 %v32
    %v71 = vunpack.c.l.b16 %v33
    %v72 = vunpack.c.l.b16 %v34
    %v73 = vunpack.c.l.b16 %v35
    %v74 = vunpack.c.l.b16 %v36
    %v75 = vunpack.c.l.b16 %v37
    %v76 = vunpack.c.l.b16 %v38
    %v77 = vunpack.c.l.b16 %v39
    %v78 = vunpack.c.l.b16 %v40
    %v79 = vunpack.c.l.b16 %v41
    %v80 = vunpack.c.l.b16 %v42
    %v81 = vpack.c.b16 %v66, %v65
    %v82 = vpack.c.b16 %v68, %v67
    %v83 = vpack.c.b16 %v70, %v69
    %v84 = vpack.c.b16 %v72, %v71
    %v85 = vpack.c.b16 %v74, %v73
    %v86 = vpack.c.b16 %v76, %v75
    %v87 = vpack.c.b16 %v78, %v77
    %v88 = vpack.c.b16 %v80, %v79
    %97 = vmatprep.subr.bf16.mxu0 0
    %98 = vmatpush1.bf16.msra.mxu0 %v88
    %99 = vmatprep.subr.bf16.mxu0 0
    %100 = vmatpush1.bf16.msra.mxu0 %v87
    %101 = vmatprep.subr.bf16.mxu0 0
    %102 = vmatpush1.bf16.msra.mxu0 %v86
    %103 = vmatprep.subr.bf16.mxu0 0
    %104 = vmatpush1.bf16.msra.mxu0 %v85
    %105 = vmatprep.subr.bf16.mxu0 0
    %106 = vmatpush1.bf16.msra.mxu0 %v84
    %107 = vmatprep.subr.bf16.mxu0 0
    %108 = vmatpush1.bf16.msra.mxu0 %v83
    %109 = vmatprep.subr.bf16.mxu0 0
    %110 = vmatpush1.bf16.msra.mxu0 %v82
    %111 = vmatprep.subr.bf16.mxu0 0
    %112 = vmatpush1.bf16.msra.mxu0 %v81
    %113 = vmatprep.subr.bf16.mxu0 0
    %114 = vmatpush2.bf16.msra.mxu0 0
    %115 = vmatprep.subr.bf16.mxu0 0
    %116 = vmatpush2.bf16.msra.mxu0 0
    %117 = vmatprep.subr.bf16.mxu0 0
    %118 = vmatpush2.bf16.msra.mxu0 0
    %119 = vmatprep.subr.bf16.mxu0 0
    %120 = vmatpush2.bf16.msra.mxu0 0
    %121 = vmatprep.subr.bf16.mxu0 0
    %122 = vmatpush2.bf16.msra.mxu0 0
    %123 = vmatprep.subr.bf16.mxu0 0
    %124 = vmatpush2.bf16.msra.mxu0 0
    %125 = vmatprep.subr.bf16.mxu0 0
    %126 = vmatpush2.bf16.msra.mxu0 0
    %127 = vmatprep.subr.bf16.mxu0 0
    %128 = vmatpush2.bf16.msra.mxu0 0
    %129 = vmatprep.mubr.bf16.mxu0 0
    %130 = vmatmul.mubr.bf16.gmra.mxu0 %v47
    %v131 = vpop.f32.mrf.mxu0
    %v132 = vadd.f32 0.0, %v131
    %v133 = vpop.f32.mrf.mxu0
    %v134 = vpop.f32.mrf.mxu0
    %v135 = vadd.f32 0.0, %v134
    %v136 = vpop.f32.mrf.mxu0
    %137 = vdwg.mxu0
    %v138 = vadd.f32 %v23, %v132
    %v139 = vadd.f32 %v24, %v135
    %vm140 = vcmask 261120
    %141 = vst.msk [vmem:[#allocation2] sm:$0xff] %vm140, %v138
    %142 = vst.msk [vmem:[#allocation2 + $0x8] sm:$0xff] %vm140, %v139
    // Predicated region
    $region18: #{attention_forward.5} parent=1 // pred_check
      %p143 = pneg %p16
    $region19: #{attention_forward.5} parent=1 // pred_check_branch
      %145 = sbr.rel (%p143) target = $region21
    $region20: #{attention_forward.5} parent=1 // pred_region
      %v146 = vld [vmem:[#allocation2] sm:$0xff]
      %v147 = vld [vmem:[#allocation2 + $0x8] sm:$0xff]
      %v148 = vld [vmem:[%s2] sm:$0x1]
      %v150 = vlaneseq
      %v151 = vshrl.u32 %v150, 7
      %v152 = vsub.s32 0, %v151
      %v153 = vrot.slane %v148, %v152
      %v155 = vadd.f32 %v146, %v153
      %v156 = vadd.f32 %v147, %v153
      %157 = vst.msk [vmem:[#allocation3] sm:$0xff] %vm140, %v155
      %158 = vst.msk [vmem:[#allocation3 + $0x8] sm:$0xff] %vm140, %v156
    $region21: #{attention_forward.5} parent=1 // pred_fallthru
      _
    // Predicated region
    $region22: #{attention_forward.5} parent=1 // pred_check
      _
    $region23: #{attention_forward.5} parent=1 // pred_check_branch
      %160 = sbr.rel (0) target = $region25
    $region24: #{attention_forward.5} parent=1 // pred_region
      %s162 = ssub.s32 256, 256
      %163 = vsyncadd [#allocation4], %s162
      %s164 = sshll.u32 [#allocation3], 4
      %s165 = int_to_ptr.vmem [resolvable:$true] %s164
      %170 = dma.vmem_to_hbm [thread:$0]  %s165, 256, %s3, [#allocation4], 128, 128, 8
    $region25: #{attention_forward.5} parent=1 // pred_fallthru
      _
    // Predicated region
    $region26: #{attention_forward.5} parent=1 // pred_check
      _
    $region27: #{attention_forward.5} parent=1 // pred_check_branch
      %172 = sbr.rel (0) target = $region29
    $region28: #{attention_forward.5} parent=1 // pred_region
      %173 = dma.done [#allocation4], 256
    $region29: #{attention_forward.5} parent=1 // pred_fallthru
      _
    %174 = vsyncpa [#allocation4], 1

</llo_original>
